<compile_context>
chip_gen: v7x
topology: tpu7x:2x2x1
jax: 0.10.0
libtpu: 0.0.40
codegen_flags: <defaults>
</compile_context>

<pallas_src>
import functools

import jax
import jax.numpy as jnp
from jax import lax
from jax.experimental import pallas as pl
from jax.experimental.pallas import tpu as pltpu

# Above the 16/32 MiB scoped defaults, below physical VMEM on v5e/v6e/v7x.
_VMEM_LIMIT = 48 * 1024 * 1024


def _pick_tile(dim, preferred, align):
    """Largest tile <= preferred that is a multiple of `align` and divides `dim`.
    Falls back to the full dimension (no tiling / no padding needed)."""
    if dim <= preferred:
        return dim
    t = (preferred // align) * align
    while t >= align:
        if dim % t == 0:
            return t
        t -= align
    return dim


# ------------------------- kernel 1: tiled matmul + bias (+ReLU) -------------
def _matmul_bias_kernel(x_ref, w_ref, b_ref, o_ref, acc_ref, *, relu):
    # x_ref: (TM, TK) bf16, w_ref: (TK, TN) bf16 (BN scale pre-folded),
    # b_ref: (1, TN) f32, acc_ref: (TM, TN) f32 scratch, o_ref: (TM, TN).
    @pl.when(pl.program_id(2) == 0)
    def _init():
        acc_ref[...] = jnp.zeros_like(acc_ref)

    acc_ref[...] += jnp.dot(x_ref[...], w_ref[...],
                            preferred_element_type=jnp.float32)

    @pl.when(pl.program_id(2) == pl.num_programs(2) - 1)
    def _finalize():
        y = acc_ref[...] + b_ref[...]
        if relu:
            y = jnp.maximum(y, 0.0)
        o_ref[...] = y.astype(o_ref.dtype)


def fused_matmul_bias(x2d, w, bias, *, relu, out_dtype):
    """y = [relu](x2d @ w + bias), bf16 inputs, f32 accumulate, tiled (M,N,K)."""
    M, K = x2d.shape
    Cout = w.shape[1]
    TM = _pick_tile(M, 512, 128)
    TN = _pick_tile(Cout, 256, 128)
    TK = _pick_tile(K, 512, 128)
    grid = (M // TM, Cout // TN, K // TK)
    return pl.pallas_call(
        functools.partial(_matmul_bias_kernel, relu=relu),
        out_shape=jax.ShapeDtypeStruct((M, Cout), out_dtype),
        grid=grid,
        in_specs=[
            pl.BlockSpec((TM, TK), lambda i, j, k: (i, k)),   # activation tile
            pl.BlockSpec((TK, TN), lambda i, j, k: (k, j)),   # weight tile
            pl.BlockSpec((1, TN), lambda i, j, k: (0, j)),    # BN bias
        ],
        out_specs=pl.BlockSpec((TM, TN), lambda i, j, k: (i, j)),
        scratch_shapes=[pltpu.VMEM((TM, TN), jnp.float32)],
        compiler_params=pltpu.CompilerParams(
            dimension_semantics=("parallel", "parallel", "arbitrary"),
            vmem_limit_bytes=_VMEM_LIMIT),
    )(x2d, w, bias)


# ---------------- kernel 2: grouped 1x3x3 conv + BN + ReLU fused with c ------
def _conv_b_c_kernel(xb_ref, wb_ref, wc_ref, bb_ref, bc_ref, o_ref, *,
                     num_groups, cg):
    # xb_ref: (TM, G*9*cg) bf16, group-major im2col layout
    # wb_ref: (G, 9*cg, cg) bf16 (BN-b scale folded), wc_ref: (Cinner, Cout) bf16
    # bb_ref: (1, Cinner) f32, bc_ref: (1, Cout) f32, o_ref: (TM, Cout)
    x = xb_ref[...]
    group_outs = []
    for g in range(num_groups):                     # static python loop
        xg = x[:, g * 9 * cg:(g + 1) * 9 * cg]      # (TM, 9*cg) contiguous slice
        group_outs.append(
            jnp.dot(xg, wb_ref[g], preferred_element_type=jnp.float32))
    yb = jnp.concatenate(group_outs, axis=1)        # (TM, Cinner) f32
    yb = jnp.maximum(yb + bb_ref[...], 0.0)         # BN-b bias + ReLU in f32
    yc = jnp.dot(yb.astype(wc_ref.dtype), wc_ref[...],
                 preferred_element_type=jnp.float32)
    o_ref[...] = (yc + bc_ref[...]).astype(o_ref.dtype)


def fused_conv_b_c(xb, wb_all, wc, bias_b, bias_c, *, num_groups, cg, out_dtype):
    M, K9 = xb.shape
    Cinner = wc.shape[0]
    Cout = wc.shape[1]
    TM = _pick_tile(M, 512, 128)
    grid = (M // TM,)
    return pl.pallas_call(
        functools.partial(_conv_b_c_kernel, num_groups=num_groups, cg=cg),
        out_shape=jax.ShapeDtypeStruct((M, Cout), out_dtype),
        grid=grid,
        in_specs=[
            pl.BlockSpec((TM, K9), lambda i: (i, 0)),                     # im2col tile
            pl.BlockSpec((num_groups, 9 * cg, cg), lambda i: (0, 0, 0)),  # grouped weights
            pl.BlockSpec((Cinner, Cout), lambda i: (0, 0)),               # c weight
            pl.BlockSpec((1, Cinner), lambda i: (0, 0)),                  # BN-b bias
            pl.BlockSpec((1, Cout), lambda i: (0, 0)),                    # BN-c bias
        ],
        out_specs=pl.BlockSpec((TM, Cout), lambda i: (i, 0)),
        compiler_params=pltpu.CompilerParams(
            dimension_semantics=("parallel",),
            vmem_limit_bytes=_VMEM_LIMIT),
    )(xb, wb_all, wc, bias_b, bias_c)


def _bn_fold(gamma, beta, mean, var, eps):
    scale = gamma / jnp.sqrt(var + eps)
    bias = beta - mean * scale
    return scale.astype(jnp.float32), bias.astype(jnp.float32)


# --------------------------- forward (wrapper) -------------------------------
def bottleneck_transform(x_ncdhw, params, *, temp_kernel_size, stride,
                         num_groups, stride_1x1=False, dilation=1, eps=1e-5,
                         compute_dtype=jnp.bfloat16):
    if isinstance(stride, int):
        stride_h, stride_w = stride, stride
    else:
        stride_h, stride_w = stride
    if stride_1x1:
        s1h, s1w, s3h, s3w = stride_h, stride_w, 1, 1
    else:
        s1h, s1w, s3h, s3w = 1, 1, stride_h, stride_w
    if isinstance(dilation, int):
        dt, dh, dw = dilation, dilation, dilation
    else:
        dt, dh, dw = dilation

    # NCDHW -> NDHWC (channels on lanes), bf16 activations for MXU + HBM relief.
    x = jnp.transpose(x_ncdhw, (0, 2, 3, 4, 1)).astype(compute_dtype)
    N, T, H, W, Cin = x.shape
    Tk = temp_kernel_size

    # ---------------- a: Tx1x1 conv + BN + ReLU ----------------
    pad_t = dt * (Tk // 2)
    eff_t = (Tk - 1) * dt + 1
    T1 = T + 2 * pad_t - eff_t + 1
    xp = jnp.pad(x, ((0, 0), (pad_t, pad_t), (0, 0), (0, 0), (0, 0)))
    # TODO(synk): the temporal taps are still materialized (Tk x activation
    # volume); a K-axis index_map over shifted temporal windows would remove
    # this extra HBM pass.
    x_cat = jnp.concatenate(
        [xp[:, kt * dt: kt * dt + T1] for kt in range(Tk)], axis=-1)
    x_cat = x_cat[:, :, ::s1h, ::s1w, :]            # 1x1 spatial stride = subsample
    _, _, H1, W1, Ka = x_cat.shape

    w_a = params["a_w"]                             # (Cinner, Cin, Tk, 1, 1)
    Cinner = w_a.shape[0]
    s_a, b_a = _bn_fold(params["a_bn_g"], params["a_bn_b"],
                        params["a_bn_m"], params["a_bn_v"], eps)
    # Fold BN scale into the weight; kernel epilogue is just bias + ReLU.
    w_a2 = (jnp.transpose(w_a[:, :, :, 0, 0], (2, 1, 0)).reshape(Tk * Cin, Cinner)
            * s_a[None, :]).astype(compute_dtype)
    a_out = fused_matmul_bias(x_cat.reshape(-1, Ka), w_a2, b_a.reshape(1, -1),
                              relu=True, out_dtype=compute_dtype)
    a_out = a_out.reshape(N, T1, H1, W1, Cinner)    # bf16 intermediate

    # -------- b: 1x3x3 grouped conv + BN + ReLU, fused with c: 1x1x1 + BN ----
    H2 = (H1 - 1) // s3h + 1
    W2 = (W1 - 1) // s3w + 1
    agp = jnp.pad(a_out, ((0, 0), (0, 0), (dh, dh), (dw, dw), (0, 0)))
    patches = []
    for kh in range(3):
        for kw in range(3):
            h0, w0 = kh * dh, kw * dw
            patches.append(agp[:, :,
                               h0:h0 + (H2 - 1) * s3h + 1:s3h,
                               w0:w0 + (W2 - 1) * s3w + 1:s3w, :])
    # TODO(synk): the 9x im2col materialization below is the remaining HBM hot
    # spot; reading strided/shifted windows of a_out directly in-kernel would
    # remove it but requires manual DMA for the strided spatial access.
    cg = Cinner // num_groups
    xb = jnp.stack(patches, axis=-2)                             # (N,T1,H2,W2,9,Cinner)
    xb = xb.reshape(N, T1, H2, W2, 9, num_groups, cg)
    xb = jnp.transpose(xb, (0, 1, 2, 3, 5, 4, 6))                # group-major taps
    xb = xb.reshape(-1, num_groups * 9 * cg)                     # (M, G*9*cg) bf16

    s_b, b_b = _bn_fold(params["b_bn_g"], params["b_bn_b"],
                        params["b_bn_m"], params["b_bn_v"], eps)
    w_b = params["b_w"][:, :, 0]                                 # (Cinner, cg, 3, 3)
    wb_all = jnp.transpose(w_b.reshape(num_groups, cg, cg, 3, 3),
                           (0, 3, 4, 2, 1)).reshape(num_groups, 9 * cg, cg)
    wb_all = (wb_all * s_b.reshape(num_groups, 1, cg)).astype(compute_dtype)

    w_c = params["c_w"][:, :, 0, 0, 0]                           # (Cout, Cinner)
    Cout = w_c.shape[0]
    s_c, b_c = _bn_fold(params["c_bn_g"], params["c_bn_b"],
                        params["c_bn_m"], params["c_bn_v"], eps)
    w_c2 = (jnp.transpose(w_c) * s_c[None, :]).astype(compute_dtype)

    out2d = fused_conv_b_c(xb, wb_all, w_c2, b_b.reshape(1, -1),
                           b_c.reshape(1, -1), num_groups=num_groups, cg=cg,
                           out_dtype=jnp.float32)
    out = out2d.reshape(N, T1, H2, W2, Cout)
    return jnp.transpose(out, (0, 4, 1, 2, 3))                   # back to NCDHW


# --------------------------- pure-JAX reference ------------------------------
def reference(x, params, *, temp_kernel_size, stride, num_groups,
              stride_1x1=False, dilation=1, eps=1e-5):
    sh, sw = (stride, stride) if isinstance(stride, int) else stride
    if stride_1x1:
        s1h, s1w, s3h, s3w = sh, sw, 1, 1
    else:
        s1h, s1w, s3h, s3w = 1, 1, sh, sw
    dt, dh, dw = (dilation,) * 3 if isinstance(dilation, int) else dilation
    Tk = temp_kernel_size
    dn = ("NCDHW", "OIDHW", "NCDHW")

    def bn(y, g, b, m, v):
        sh5 = (1, -1, 1, 1, 1)
        return (y - m.reshape(sh5)) / jnp.sqrt(v.reshape(sh5) + eps) \
            * g.reshape(sh5) + b.reshape(sh5)

    pad_t = dt * (Tk // 2)
    y = lax.conv_general_dilated(x, params["a_w"], (1, s1h, s1w),
                                 [(pad_t, pad_t), (0, 0), (0, 0)],
                                 rhs_dilation=(dt, 1, 1), dimension_numbers=dn)
    y = jnp.maximum(bn(y, params["a_bn_g"], params["a_bn_b"],
                       params["a_bn_m"], params["a_bn_v"]), 0.0)
    y = lax.conv_general_dilated(y, params["b_w"], (1, s3h, s3w),
                                 [(0, 0), (dh, dh), (dw, dw)],
                                 rhs_dilation=(1, dh, dw), dimension_numbers=dn,
                                 feature_group_count=num_groups)
    y = jnp.maximum(bn(y, params["b_bn_g"], params["b_bn_b"],
                       params["b_bn_m"], params["b_bn_v"]), 0.0)
    y = lax.conv_general_dilated(y, params["c_w"], (1, 1, 1),
                                 [(0, 0), (0, 0), (0, 0)], dimension_numbers=dn)
    y = bn(y, params["c_bn_g"], params["c_bn_b"],
           params["c_bn_m"], params["c_bn_v"])
    return y


# --------------------------------- main --------------------------------------
if __name__ == "__main__":
    dim_in, dim_inner, dim_out = 8, 8, 16
    temp_kernel_size = 3
    stride = 2              # applied to the 3x3 conv (stride_1x1=False default)
    num_groups = 2
    dilation = 1
    eps = 1e-5

    N, T, H, W = 2, 4, 8, 8

    key = jax.random.PRNGKey(0)
    ks = jax.random.split(key, 16)
    f32 = jnp.float32
    params = {
        "a_w": 0.1 * jax.random.normal(ks[0], (dim_inner, dim_in, temp_kernel_size, 1, 1), f32),
        "a_bn_g": 1.0 + 0.1 * jax.random.normal(ks[1], (dim_inner,), f32),
        "a_bn_b": 0.1 * jax.random.normal(ks[2], (dim_inner,), f32),
        "a_bn_m": 0.05 * jax.random.normal(ks[3], (dim_inner,), f32),
        "a_bn_v": 1.0 + 0.1 * jnp.abs(jax.random.normal(ks[4], (dim_inner,), f32)),
        "b_w": 0.1 * jax.random.normal(ks[5], (dim_inner, dim_inner // num_groups, 1, 3, 3), f32),
        "b_bn_g": 1.0 + 0.1 * jax.random.normal(ks[6], (dim_inner,), f32),
        "b_bn_b": 0.1 * jax.random.normal(ks[7], (dim_inner,), f32),
        "b_bn_m": 0.05 * jax.random.normal(ks[8], (dim_inner,), f32),
        "b_bn_v": 1.0 + 0.1 * jnp.abs(jax.random.normal(ks[9], (dim_inner,), f32)),
        "c_w": 0.1 * jax.random.normal(ks[10], (dim_out, dim_inner, 1, 1, 1), f32),
        "c_bn_g": 1.0 + 0.1 * jax.random.normal(ks[11], (dim_out,), f32),
        "c_bn_b": 0.1 * jax.random.normal(ks[12], (dim_out,), f32),
        "c_bn_m": 0.05 * jax.random.normal(ks[13], (dim_out,), f32),
        "c_bn_v": 1.0 + 0.1 * jnp.abs(jax.random.normal(ks[14], (dim_out,), f32)),
    }

    x = jax.random.normal(ks[15], (N, dim_in, T, H, W), f32)  # NCDHW like PyTorch

    out = bottleneck_transform(
        x, params, temp_kernel_size=temp_kernel_size, stride=stride,
        num_groups=num_groups, stride_1x1=False, dilation=dilation, eps=eps)
    out = jax.block_until_ready(out)

    ref = reference(
        x, params, temp_kernel_size=temp_kernel_size, stride=stride,
        num_groups=num_groups, stride_1x1=False, dilation=dilation, eps=eps)
    ref = jax.block_until_ready(ref)

    assert out.shape == ref.shape, (out.shape, ref.shape)
    # bf16 compute vs f32 lax.conv reference -> loosened tolerance.
    assert jnp.allclose(out, ref, atol=2e-2, rtol=2e-2), \
        float(jnp.max(jnp.abs(out - ref)))
    print("KERNEL_OK")
</pallas_src>

<mosaic_0001>
module attributes {stable_mosaic.version = 11 : i64} {
  func.func @_matmul_bias_kernel(%arg0: i32, %arg1: i32, %arg2: i32, %arg3: memref<512x24xbf16, #tpu.memory_space<vmem>>, %arg4: memref<24x8xbf16, #tpu.memory_space<vmem>>, %arg5: memref<1x8xf32, #tpu.memory_space<vmem>>, %arg6: memref<512x8xbf16, #tpu.memory_space<vmem>>, %arg7: memref<512x8xf32, #tpu.memory_space<vmem>>) attributes {dimension_semantics = [#tpu.dimension_semantics<parallel>, #tpu.dimension_semantics<parallel>, #tpu.dimension_semantics<arbitrary>], iteration_bounds = array<i64: 1, 1, 1>, scalar_prefetch = 0 : i64, scratch_operands = 1 : i64, tpu.core_type = #tpu.core_type<tc>, window_params = [{transform_indices = @transform_0, window_bounds = array<i64: 512, 24>}, {transform_indices = @transform_1, window_bounds = array<i64: 24, 8>}, {transform_indices = @transform_2, window_bounds = array<i64: 1, 8>}, {transform_indices = @transform_3, window_bounds = array<i64: 512, 8>}]} {
    %c0_i32 = arith.constant 0 : i32
    %0 = arith.cmpi eq, %arg2, %c0_i32 : i32
    %1 = arith.extui %0 : i1 to i32
    %c0_i32_0 = arith.constant 0 : i32
    %2 = arith.cmpi ne, %1, %c0_i32_0 : i32
    scf.if %2 {
      %cst_10 = arith.constant 0.000000e+00 : f32
      %12 = vector.broadcast %cst_10 : f32 to vector<512x8xf32>
      %c0_11 = arith.constant 0 : index
      %c0_12 = arith.constant 0 : index
      %13 = vector.load %arg7[%c0_11, %c0_12] : memref<512x8xf32, #tpu.memory_space<vmem>>, vector<512x8xf32>
      tpu.vector_store %arg7[%c0_11, %c0_12], %12 {strides = array<i32>} : memref<512x8xf32, #tpu.memory_space<vmem>>, vector<512x8xf32>,
    } else {
    }
    %c0 = arith.constant 0 : index
    %c0_1 = arith.constant 0 : index
    %3 = vector.load %arg7[%c0, %c0_1] : memref<512x8xf32, #tpu.memory_space<vmem>>, vector<512x8xf32>
    %c0_2 = arith.constant 0 : index
    %c0_3 = arith.constant 0 : index
    %4 = vector.load %arg3[%c0_2, %c0_3] : memref<512x24xbf16, #tpu.memory_space<vmem>>, vector<512x24xbf16>
    %c0_4 = arith.constant 0 : index
    %c0_5 = arith.constant 0 : index
    %5 = vector.load %arg4[%c0_4, %c0_5] : memref<24x8xbf16, #tpu.memory_space<vmem>>, vector<24x8xbf16>
    %cst = arith.constant dense<0.000000e+00> : vector<512x8xf32>
    %6 = tpu.matmul %4, %5, %cst {dimension_numbers = #tpu.dot_dimension_numbers<[1], [0], [0], [1], [0, 0, 1, 1], [], []>} : vector<512x24xbf16>, vector<24x8xbf16>, vector<512x8xf32> -> vector<512x8xf32>
    %7 = arith.addf %3, %6 : vector<512x8xf32>
    %c0_6 = arith.constant 0 : index
    %c0_7 = arith.constant 0 : index
    %8 = vector.load %arg7[%c0_6, %c0_7] : memref<512x8xf32, #tpu.memory_space<vmem>>, vector<512x8xf32>
    tpu.vector_store %arg7[%c0_6, %c0_7], %7 {strides = array<i32>} : memref<512x8xf32, #tpu.memory_space<vmem>>, vector<512x8xf32>,
    %c0_i32_8 = arith.constant 0 : i32
    %9 = arith.cmpi eq, %arg2, %c0_i32_8 : i32
    %10 = arith.extui %9 : i1 to i32
    %c0_i32_9 = arith.constant 0 : i32
    %11 = arith.cmpi ne, %10, %c0_i32_9 : i32
    scf.if %11 {
      %c0_10 = arith.constant 0 : index
      %c0_11 = arith.constant 0 : index
      %12 = vector.load %arg7[%c0_10, %c0_11] : memref<512x8xf32, #tpu.memory_space<vmem>>, vector<512x8xf32>
      %c0_12 = arith.constant 0 : index
      %c0_13 = arith.constant 0 : index
      %13 = vector.load %arg5[%c0_12, %c0_13] : memref<1x8xf32, #tpu.memory_space<vmem>>, vector<1x8xf32>
      %14 = vector.broadcast %13 : vector<1x8xf32> to vector<512x8xf32>
      %15 = arith.addf %12, %14 : vector<512x8xf32>
      %cst_14 = arith.constant 0.000000e+00 : f32
      %16 = vector.broadcast %cst_14 : f32 to vector<512x8xf32>
      %17 = arith.maximumf %15, %16 : vector<512x8xf32>
      %18 = arith.truncf %17 : vector<512x8xf32> to vector<512x8xbf16>
      %c0_15 = arith.constant 0 : index
      %c0_16 = arith.constant 0 : index
      %19 = vector.load %arg6[%c0_15, %c0_16] : memref<512x8xbf16, #tpu.memory_space<vmem>>, vector<512x8xbf16>
      tpu.vector_store %arg6[%c0_15, %c0_16], %18 {strides = array<i32>} : memref<512x8xbf16, #tpu.memory_space<vmem>>, vector<512x8xbf16>,
    } else {
    }
    return
  }
  func.func @transform_0(%arg0: i32, %arg1: i32, %arg2: i32) -> (i32, i32) {
    %c0_i32 = arith.constant 0 : i32
    return %arg0, %arg2 : i32, i32
  }
  func.func @transform_1(%arg0: i32, %arg1: i32, %arg2: i32) -> (i32, i32) {
    %c0_i32 = arith.constant 0 : i32
    return %arg2, %arg1 : i32, i32
  }
  func.func @transform_2(%arg0: i32, %arg1: i32, %arg2: i32) -> (i32, i32) {
    %c0_i32 = arith.constant 0 : i32
    %c0_i32_0 = arith.constant 0 : i32
    return %c0_i32, %arg1 : i32, i32
  }
  func.func @transform_3(%arg0: i32, %arg1: i32, %arg2: i32) -> (i32, i32) {
    %c0_i32 = arith.constant 0 : i32
    return %arg0, %arg1 : i32, i32
  }
}

</mosaic_0001>

<llo_original>
// kernel: tpu_custom_call.1
$region0: #{tpu_custom_call.1}
  #allocation0 [shape = 'u32[]', space=smem, size = 0x4, offset = 0x4, fixed_abs, tag = 'smem constant byte address 0x4 - core index']
  #allocation1 [shape = 'u32[144,128]{1,0:T(1,128)}', space=vmem, size = 0x12000, scoped, tag = 'internal scratch']
  #allocation2 [shape = 'f32[512,8]{1,0:T(8,128)}', space=vmem, size = 0x40000, scoped, tag = 'scratch operand']
  %s0 = inlined_call_operand.vmem [shape: bf16[512,24], index: 0, kind: input, shape index: {}]
  %s1 = inlined_call_operand.vmem [shape: bf16[24,8], index: 1, kind: input, shape index: {}]
  %s2 = inlined_call_operand.vmem [shape: f32[1,8], index: 2, kind: input, shape index: {}]
  %s3 = inlined_call_operand.vmem [shape: bf16[512,8], index: 3, kind: output, shape index: {}]
  %s4 = sld [smem:[#allocation0]]
  $region30: #{tpu_custom_call.1} parent=0
    _
  %s6 = ssub.s32 1, %s4
  %s7 = scalar_select 0, %s6, %s4
  // Predicated region
  $region2: #{tpu_custom_call.1} parent=0 // pred_check
    _
  $region3: #{tpu_custom_call.1} parent=0 // pred_check_branch
    %9 = sbr.rel (0) target = $region5
  $region4: #{tpu_custom_call.1} parent=0 // pred_region
    _
  $region5: #{tpu_custom_call.1} parent=0 // pred_fallthru
    _
  // Predicated region
  $region6: #{tpu_custom_call.1} parent=0 // pred_check
    _
  $region7: #{tpu_custom_call.1} parent=0 // pred_check_branch
    %11 = sbr.rel (0) target = $region9
  $region8: #{tpu_custom_call.1} parent=0 // pred_region
    _
  $region9: #{tpu_custom_call.1} parent=0 // pred_fallthru
    _
  // Predicated region
  $region10: #{tpu_custom_call.1} parent=0 // pred_check
    _
  $region11: #{tpu_custom_call.1} parent=0 // pred_check_branch
    %13 = sbr.rel (0) target = $region13
  $region12: #{tpu_custom_call.1} parent=0 // pred_region
    _
  $region13: #{tpu_custom_call.1} parent=0 // pred_fallthru
    _
  %p15 = scmp.eq.s32.totalorder 0, 0
  // Predicated region
  $region14: #{tpu_custom_call.1} parent=0 // pred_check
    %p16 = pneg %p15
  $region15: #{tpu_custom_call.1} parent=0 // pred_check_branch
    %18 = sbr.rel (%p16) target = $region17
  $region16: #{tpu_custom_call.1} parent=0 // pred_region
    %vm19 = vcmask 64512
    %20 = vst.msk [vmem:[#allocation2] sm:$0xff] %vm19, 0.0
    %21 = vst.msk [vmem:[#allocation2 + $0x8] sm:$0xff] %vm19, 0.0
    %22 = vst.msk [vmem:[#allocation2 + $0x10] sm:$0xff] %vm19, 0.0
    %23 = vst.msk [vmem:[#allocation2 + $0x18] sm:$0xff] %vm19, 0.0
    %24 = vst.msk [vmem:[#allocation2 + $0x20] sm:$0xff] %vm19, 0.0
    %25 = vst.msk [vmem:[#allocation2 + $0x28] sm:$0xff] %vm19, 0.0
    %26 = vst.msk [vmem:[#allocation2 + $0x30] sm:$0xff] %vm19, 0.0
    %27 = vst.msk [vmem:[#allocation2 + $0x38] sm:$0xff] %vm19, 0.0
    %28 = vst.msk [vmem:[#allocation2 + $0x40] sm:$0xff] %vm19, 0.0
    %29 = vst.msk [vmem:[#allocation2 + $0x48] sm:$0xff] %vm19, 0.0
    %30 = vst.msk [vmem:[#allocation2 + $0x50] sm:$0xff] %vm19, 0.0
    %31 = vst.msk [vmem:[#allocation2 + $0x58] sm:$0xff] %vm19, 0.0
    %32 = vst.msk [vmem:[#allocation2 + $0x60] sm:$0xff] %vm19, 0.0
    %33 = vst.msk [vmem:[#allocation2 + $0x68] sm:$0xff] %vm19, 0.0
    %34 = vst.msk [vmem:[#allocation2 + $0x70] sm:$0xff] %vm19, 0.0
    %35 = vst.msk [vmem:[#allocation2 + $0x78] sm:$0xff] %vm19, 0.0
    %36 = vst.msk [vmem:[#allocation2 + $0x80] sm:$0xff] %vm19, 0.0
    %37 = vst.msk [vmem:[#allocation2 + $0x88] sm:$0xff] %vm19, 0.0
    %38 = vst.msk [vmem:[#allocation2 + $0x90] sm:$0xff] %vm19, 0.0
    %39 = vst.msk [vmem:[#allocation2 + $0x98] sm:$0xff] %vm19, 0.0
    %40 = vst.msk [vmem:[#allocation2 + $0xa0] sm:$0xff] %vm19, 0.0
    %41 = vst.msk [vmem:[#allocation2 + $0xa8] sm:$0xff] %vm19, 0.0
    %42 = vst.msk [vmem:[#allocation2 + $0xb0] sm:$0xff] %vm19, 0.0
    %43 = vst.msk [vmem:[#allocation2 + $0xb8] sm:$0xff] %vm19, 0.0
    %44 = vst.msk [vmem:[#allocation2 + $0xc0] sm:$0xff] %vm19, 0.0
    %45 = vst.msk [vmem:[#allocation2 + $0xc8] sm:$0xff] %vm19, 0.0
    %46 = vst.msk [vmem:[#allocation2 + $0xd0] sm:$0xff] %vm19, 0.0
    %47 = vst.msk [vmem:[#allocation2 + $0xd8] sm:$0xff] %vm19, 0.0
    %48 = vst.msk [vmem:[#allocation2 + $0xe0] sm:$0xff] %vm19, 0.0
    %49 = vst.msk [vmem:[#allocation2 + $0xe8] sm:$0xff] %vm19, 0.0
    %50 = vst.msk [vmem:[#allocation2 + $0xf0] sm:$0xff] %vm19, 0.0
    %51 = vst.msk [vmem:[#allocation2 + $0xf8] sm:$0xff] %vm19, 0.0
    %52 = vst.msk [vmem:[#allocation2 + $0x100] sm:$0xff] %vm19, 0.0
    %53 = vst.msk [vmem:[#allocation2 + $0x108] sm:$0xff] %vm19, 0.0
    %54 = vst.msk [vmem:[#allocation2 + $0x110] sm:$0xff] %vm19, 0.0
    %55 = vst.msk [vmem:[#allocation2 + $0x118] sm:$0xff] %vm19, 0.0
    %56 = vst.msk [vmem:[#allocation2 + $0x120] sm:$0xff] %vm19, 0.0
    %57 = vst.msk [vmem:[#allocation2 + $0x128] sm:$0xff] %vm19, 0.0
    %58 = vst.msk [vmem:[#allocation2 + $0x130] sm:$0xff] %vm19, 0.0
    %59 = vst.msk [vmem:[#allocation2 + $0x138] sm:$0xff] %vm19, 0.0
    %60 = vst.msk [vmem:[#allocation2 + $0x140] sm:$0xff] %vm19, 0.0
    %61 = vst.msk [vmem:[#allocation2 + $0x148] sm:$0xff] %vm19, 0.0
    %62 = vst.msk [vmem:[#allocation2 + $0x150] sm:$0xff] %vm19, 0.0
    %63 = vst.msk [vmem:[#allocation2 + $0x158] sm:$0xff] %vm19, 0.0
    %64 = vst.msk [vmem:[#allocation2 + $0x160] sm:$0xff] %vm19, 0.0
    %65 = vst.msk [vmem:[#allocation2 + $0x168] sm:$0xff] %vm19, 0.0
    %66 = vst.msk [vmem:[#allocation2 + $0x170] sm:$0xff] %vm19, 0.0
    %67 = vst.msk [vmem:[#allocation2 + $0x178] sm:$0xff] %vm19, 0.0
    %68 = vst.msk [vmem:[#allocation2 + $0x180] sm:$0xff] %vm19, 0.0
    %69 = vst.msk [vmem:[#allocation2 + $0x188] sm:$0xff] %vm19, 0.0
    %70 = vst.msk [vmem:[#allocation2 + $0x190] sm:$0xff] %vm19, 0.0
    %71 = vst.msk [vmem:[#allocation2 + $0x198] sm:$0xff] %vm19, 0.0
    %72 = vst.msk [vmem:[#allocation2 + $0x1a0] sm:$0xff] %vm19, 0.0
    %73 = vst.msk [vmem:[#allocation2 + $0x1a8] sm:$0xff] %vm19, 0.0
    %74 = vst.msk [vmem:[#allocation2 + $0x1b0] sm:$0xff] %vm19, 0.0
    %75 = vst.msk [vmem:[#allocation2 + $0x1b8] sm:$0xff] %vm19, 0.0
    %76 = vst.msk [vmem:[#allocation2 + $0x1c0] sm:$0xff] %vm19, 0.0
    %77 = vst.msk [vmem:[#allocation2 + $0x1c8] sm:$0xff] %vm19, 0.0
    %78 = vst.msk [vmem:[#allocation2 + $0x1d0] sm:$0xff] %vm19, 0.0
    %79 = vst.msk [vmem:[#allocation2 + $0x1d8] sm:$0xff] %vm19, 0.0
    %80 = vst.msk [vmem:[#allocation2 + $0x1e0] sm:$0xff] %vm19, 0.0
    %81 = vst.msk [vmem:[#allocation2 + $0x1e8] sm:$0xff] %vm19, 0.0
    %82 = vst.msk [vmem:[#allocation2 + $0x1f0] sm:$0xff] %vm19, 0.0
    %83 = vst.msk [vmem:[#allocation2 + $0x1f8] sm:$0xff] %vm19, 0.0
  $region17: #{tpu_custom_call.1} parent=0 // pred_fallthru
    _
  %v84 = vld [vmem:[#allocation2] sm:$0xff]
  %v85 = vld [vmem:[#allocation2 + $0x8] sm:$0xff]
  %v86 = vld [vmem:[#allocation2 + $0x10] sm:$0xff]
  %v87 = vld [vmem:[#allocation2 + $0x18] sm:$0xff]
  %v88 = vld [vmem:[#allocation2 + $0x20] sm:$0xff]
  %v89 = vld [vmem:[#allocation2 + $0x28] sm:$0xff]
  %v90 = vld [vmem:[#allocation2 + $0x30] sm:$0xff]
  %v91 = vld [vmem:[#allocation2 + $0x38] sm:$0xff]
  %v92 = vld [vmem:[#allocation2 + $0x40] sm:$0xff]
  %v93 = vld [vmem:[#allocation2 + $0x48] sm:$0xff]
  %v94 = vld [vmem:[#allocation2 + $0x50] sm:$0xff]
  %v95 = vld [vmem:[#allocation2 + $0x58] sm:$0xff]
  %v96 = vld [vmem:[#allocation2 + $0x60] sm:$0xff]
  %v97 = vld [vmem:[#allocation2 + $0x68] sm:$0xff]
  %v98 = vld [vmem:[#allocation2 + $0x70] sm:$0xff]
  %v99 = vld [vmem:[#allocation2 + $0x78] sm:$0xff]
  %v100 = vld [vmem:[#allocation2 + $0x80] sm:$0xff]
  %v101 = vld [vmem:[#allocation2 + $0x88] sm:$0xff]
  %v102 = vld [vmem:[#allocation2 + $0x90] sm:$0xff]
  %v103 = vld [vmem:[#allocation2 + $0x98] sm:$0xff]
  %v104 = vld [vmem:[#allocation2 + $0xa0] sm:$0xff]
  %v105 = vld [vmem:[#allocation2 + $0xa8] sm:$0xff]
  %v106 = vld [vmem:[#allocation2 + $0xb0] sm:$0xff]
  %v107 = vld [vmem:[#allocation2 + $0xb8] sm:$0xff]
  %v108 = vld [vmem:[#allocation2 + $0xc0] sm:$0xff]
  %v109 = vld [vmem:[#allocation2 + $0xc8] sm:$0xff]
  %v110 = vld [vmem:[#allocation2 + $0xd0] sm:$0xff]
  %v111 = vld [vmem:[#allocation2 + $0xd8] sm:$0xff]
  %v112 = vld [vmem:[#allocation2 + $0xe0] sm:$0xff]
  %v113 = vld [vmem:[#allocation2 + $0xe8] sm:$0xff]
  %v114 = vld [vmem:[#allocation2 + $0xf0] sm:$0xff]
  %v115 = vld [vmem:[#allocation2 + $0xf8] sm:$0xff]
  %v116 = vld [vmem:[#allocation2 + $0x100] sm:$0xff]
  %v117 = vld [vmem:[#allocation2 + $0x108] sm:$0xff]
  %v118 = vld [vmem:[#allocation2 + $0x110] sm:$0xff]
  %v119 = vld [vmem:[#allocation2 + $0x118] sm:$0xff]
  %v120 = vld [vmem:[#allocation2 + $0x120] sm:$0xff]
  %v121 = vld [vmem:[#allocation2 + $0x128] sm:$0xff]
  %v122 = vld [vmem:[#allocation2 + $0x130] sm:$0xff]
  %v123 = vld [vmem:[#allocation2 + $0x138] sm:$0xff]
  %v124 = vld [vmem:[#allocation2 + $0x140] sm:$0xff]
  %v125 = vld [vmem:[#allocation2 + $0x148] sm:$0xff]
  %v126 = vld [vmem:[#allocation2 + $0x150] sm:$0xff]
  %v127 = vld [vmem:[#allocation2 + $0x158] sm:$0xff]
  %v128 = vld [vmem:[#allocation2 + $0x160] sm:$0xff]
  %v129 = vld [vmem:[#allocation2 + $0x168] sm:$0xff]
  %v130 = vld [vmem:[#allocation2 + $0x170] sm:$0xff]
  %v131 = vld [vmem:[#allocation2 + $0x178] sm:$0xff]
  %v132 = vld [vmem:[#allocation2 + $0x180] sm:$0xff]
  %v133 = vld [vmem:[#allocation2 + $0x188] sm:$0xff]
  %v134 = vld [vmem:[#allocation2 + $0x190] sm:$0xff]
  %v135 = vld [vmem:[#allocation2 + $0x198] sm:$0xff]
  %v136 = vld [vmem:[#allocation2 + $0x1a0] sm:$0xff]
  %v137 = vld [vmem:[#allocation2 + $0x1a8] sm:$0xff]
  %v138 = vld [vmem:[#allocation2 + $0x1b0] sm:$0xff]
  %v139 = vld [vmem:[#allocation2 + $0x1b8] sm:$0xff]
  %v140 = vld [vmem:[#allocation2 + $0x1c0] sm:$0xff]
  %v141 = vld [vmem:[#allocation2 + $0x1c8] sm:$0xff]
  %v142 = vld [vmem:[#allocation2 + $0x1d0] sm:$0xff]
  %v143 = vld [vmem:[#allocation2 + $0x1d8] sm:$0xff]
  %v144 = vld [vmem:[#allocation2 + $0x1e0] sm:$0xff]
  %v145 = vld [vmem:[#allocation2 + $0x1e8] sm:$0xff]
  %v146 = vld [vmem:[#allocation2 + $0x1f0] sm:$0xff]
  %v147 = vld [vmem:[#allocation2 + $0x1f8] sm:$0xff]
  %v148 = vld [vmem:[%s0] sm:$0xf]
  %v149 = vld [vmem:[%s0 + $0x4] sm:$0xf]
  %v150 = vld [vmem:[%s0 + $0x8] sm:$0xf]
  %v151 = vld [vmem:[%s0 + $0xc] sm:$0xf]
  %v152 = vld [vmem:[%s0 + $0x10] sm:$0xf]
  %v153 = vld [vmem:[%s0 + $0x14] sm:$0xf]
  %v154 = vld [vmem:[%s0 + $0x18] sm:$0xf]
  %v155 = vld [vmem:[%s0 + $0x1c] sm:$0xf]
  %v156 = vld [vmem:[%s0 + $0x20] sm:$0xf]
  %v157 = vld [vmem:[%s0 + $0x24] sm:$0xf]
  %v158 = vld [vmem:[%s0 + $0x28] sm:$0xf]
  %v159 = vld [vmem:[%s0 + $0x2c] sm:$0xf]
  %v160 = vld [vmem:[%s0 + $0x30] sm:$0xf]
  %v161 = vld [vmem:[%s0 + $0x34] sm:$0xf]
  %v162 = vld [vmem:[%s0 + $0x38] sm:$0xf]
  %v163 = vld [vmem:[%s0 + $0x3c] sm:$0xf]
  %v164 = vld [vmem:[%s0 + $0x40] sm:$0xf]
  %v165 = vld [vmem:[%s0 + $0x44] sm:$0xf]
  %v166 = vld [vmem:[%s0 + $0x48] sm:$0xf]
  %v167 = vld [vmem:[%s0 + $0x4c] sm:$0xf]
  %v168 = vld [vmem:[%s0 + $0x50] sm:$0xf]
  %v169 = vld [vmem:[%s0 + $0x54] sm:$0xf]
  %v170 = vld [vmem:[%s0 + $0x58] sm:$0xf]
  %v171 = vld [vmem:[%s0 + $0x5c] sm:$0xf]
  %v172 = vld [vmem:[%s0 + $0x60] sm:$0xf]
  %v173 = vld [vmem:[%s0 + $0x64] sm:$0xf]
  %v174 = vld [vmem:[%s0 + $0x68] sm:$0xf]
  %v175 = vld [vmem:[%s0 + $0x6c] sm:$0xf]
  %v176 = vld [vmem:[%s0 + $0x70] sm:$0xf]
  %v177 = vld [vmem:[%s0 + $0x74] sm:$0xf]
  %v178 = vld [vmem:[%s0 + $0x78] sm:$0xf]
  %v179 = vld [vmem:[%s0 + $0x7c] sm:$0xf]
  %v180 = vld [vmem:[%s0 + $0x80] sm:$0xf]
  %v181 = vld [vmem:[%s0 + $0x84] sm:$0xf]
  %v182 = vld [vmem:[%s0 + $0x88] sm:$0xf]
  %v183 = vld [vmem:[%s0 + $0x8c] sm:$0xf]
  %v184 = vld [vmem:[%s0 + $0x90] sm:$0xf]
  %v185 = vld [vmem:[%s0 + $0x94] sm:$0xf]
  %v186 = vld [vmem:[%s0 + $0x98] sm:$0xf]
  %v187 = vld [vmem:[%s0 + $0x9c] sm:$0xf]
  %v188 = vld [vmem:[%s0 + $0xa0] sm:$0xf]
  %v189 = vld [vmem:[%s0 + $0xa4] sm:$0xf]
  %v190 = vld [vmem:[%s0 + $0xa8] sm:$0xf]
  %v191 = vld [vmem:[%s0 + $0xac] sm:$0xf]
  %v192 = vld [vmem:[%s0 + $0xb0] sm:$0xf]
  %v193 = vld [vmem:[%s0 + $0xb4] sm:$0xf]
  %v194 = vld [vmem:[%s0 + $0xb8] sm:$0xf]
  %v195 = vld [vmem:[%s0 + $0xbc] sm:$0xf]
  %v196 = vld [vmem:[%s0 + $0xc0] sm:$0xf]
  %v197 = vld [vmem:[%s0 + $0xc4] sm:$0xf]
  %v198 = vld [vmem:[%s0 + $0xc8] sm:$0xf]
  %v199 = vld [vmem:[%s0 + $0xcc] sm:$0xf]
  %v200 = vld [vmem:[%s0 + $0xd0] sm:$0xf]
  %v201 = vld [vmem:[%s0 + $0xd4] sm:$0xf]
  %v202 = vld [vmem:[%s0 + $0xd8] sm:$0xf]
  %v203 = vld [vmem:[%s0 + $0xdc] sm:$0xf]
  %v204 = vld [vmem:[%s0 + $0xe0] sm:$0xf]
  %v205 = vld [vmem:[%s0 + $0xe4] sm:$0xf]
  %v206 = vld [vmem:[%s0 + $0xe8] sm:$0xf]
  %v207 = vld [vmem:[%s0 + $0xec] sm:$0xf]
  %v208 = vld [vmem:[%s0 + $0xf0] sm:$0xf]
  %v209 = vld [vmem:[%s0 + $0xf4] sm:$0xf]
  %v210 = vld [vmem:[%s0 + $0xf8] sm:$0xf]
  %v211 = vld [vmem:[%s0 + $0xfc] sm:$0xf]
  %v212 = vld [vmem:[%s1] sm:$0xf]
  %v213 = vld [vmem:[%s1 + $0x4] sm:$0xf]
  %v214 = vld [vmem:[%s1 + $0x8] sm:$0xf]
  %v279 = vunpack.c.l.b16 %v148
  %v280 = vunpack.c.l.b16 %v149
  %v281 = vunpack.c.l.b16 %v150
  %v282 = vunpack.c.l.b16 %v151
  %v283 = vunpack.c.l.b16 %v152
  %v284 = vunpack.c.l.b16 %v153
  %v285 = vunpack.c.l.b16 %v154
  %v286 = vunpack.c.l.b16 %v155
  %v287 = vunpack.c.l.b16 %v156
  %v288 = vunpack.c.l.b16 %v157
  %v289 = vunpack.c.l.b16 %v158
  %v290 = vunpack.c.l.b16 %v159
  %v291 = vunpack.c.l.b16 %v160
  %v292 = vunpack.c.l.b16 %v161
  %v293 = vunpack.c.l.b16 %v162
  %v294 = vunpack.c.l.b16 %v163
  %v295 = vunpack.c.l.b16 %v164
  %v296 = vunpack.c.l.b16 %v165
  %v297 = vunpack.c.l.b16 %v166
  %v298 = vunpack.c.l.b16 %v167
  %v299 = vunpack.c.l.b16 %v168
  %v300 = vunpack.c.l.b16 %v169
  %v301 = vunpack.c.l.b16 %v170
  %v302 = vunpack.c.l.b16 %v171
  %v303 = vunpack.c.l.b16 %v172
  %v304 = vunpack.c.l.b16 %v173
  %v305 = vunpack.c.l.b16 %v174
  %v306 = vunpack.c.l.b16 %v175
  %v307 = vunpack.c.l.b16 %v176
  %v308 = vunpack.c.l.b16 %v177
  %v309 = vunpack.c.l.b16 %v178
  %v310 = vunpack.c.l.b16 %v179
  %v311 = vunpack.c.l.b16 %v180
  %v312 = vunpack.c.l.b16 %v181
  %v313 = vunpack.c.l.b16 %v182
  %v314 = vunpack.c.l.b16 %v183
  %v315 = vunpack.c.l.b16 %v184
  %v316 = vunpack.c.l.b16 %v185
  %v317 = vunpack.c.l.b16 %v186
  %v318 = vunpack.c.l.b16 %v187
  %v319 = vunpack.c.l.b16 %v188
  %v320 = vunpack.c.l.b16 %v189
  %v321 = vunpack.c.l.b16 %v190
  %v322 = vunpack.c.l.b16 %v191
  %v323 = vunpack.c.l.b16 %v192
  %v324 = vunpack.c.l.b16 %v193
  %v325 = vunpack.c.l.b16 %v194
  %v326 = vunpack.c.l.b16 %v195
  %v327 = vunpack.c.l.b16 %v196
  %v328 = vunpack.c.l.b16 %v197
  %v329 = vunpack.c.l.b16 %v198
  %v330 = vunpack.c.l.b16 %v199
  %v331 = vunpack.c.l.b16 %v200
  %v332 = vunpack.c.l.b16 %v201
  %v333 = vunpack.c.l.b16 %v202
  %v334 = vunpack.c.l.b16 %v203
  %v335 = vunpack.c.l.b16 %v204
  %v336 = vunpack.c.l.b16 %v205
  %v337 = vunpack.c.l.b16 %v206
  %v338 = vunpack.c.l.b16 %v207
  %v339 = vunpack.c.l.b16 %v208
  %v340 = vunpack.c.l.b16 %v209
  %v341 = vunpack.c.l.b16 %v210
  %v342 = vunpack.c.l.b16 %v211
  %v343 = vpack.c.b16 %v280, %v279
  %v344 = vpack.c.b16 %v282, %v281
  %v345 = vpack.c.b16 %v284, %v283
  %v346 = vpack.c.b16 %v286, %v285
  %v347 = vpack.c.b16 %v288, %v287
  %v348 = vpack.c.b16 %v290, %v289
  %v349 = vpack.c.b16 %v292, %v291
  %v350 = vpack.c.b16 %v294, %v293
  %v351 = vpack.c.b16 %v296, %v295
  %v352 = vpack.c.b16 %v298, %v297
  %v353 = vpack.c.b16 %v300, %v299
  %v354 = vpack.c.b16 %v302, %v301
  %v355 = vpack.c.b16 %v304, %v303
  %v356 = vpack.c.b16 %v306, %v305
  %v357 = vpack.c.b16 %v308, %v307
  %v358 = vpack.c.b16 %v310, %v309
  %v359 = vpack.c.b16 %v312, %v311
  %v360 = vpack.c.b16 %v314, %v313
  %v361 = vpack.c.b16 %v316, %v315
  %v362 = vpack.c.b16 %v318, %v317
  %v363 = vpack.c.b16 %v320, %v319
  %v364 = vpack.c.b16 %v322, %v321
  %v365 = vpack.c.b16 %v324, %v323
  %v366 = vpack.c.b16 %v326, %v325
  %v367 = vpack.c.b16 %v328, %v327
  %v368 = vpack.c.b16 %v330, %v329
  %v369 = vpack.c.b16 %v332, %v331
  %v370 = vpack.c.b16 %v334, %v333
  %v371 = vpack.c.b16 %v336, %v335
  %v372 = vpack.c.b16 %v338, %v337
  %v373 = vpack.c.b16 %v340, %v339
  %v374 = vpack.c.b16 %v342, %v341
  %v378 = vunpack.c.l.b16 %v212
  %v379 = vunpack.c.l.b16 %v213
  %v380 = vunpack.c.l.b16 %v214
  %v381 = vpack.c.b16 %v379, %v378
  %v382 = vpack.c.b16 %v380, %v380
  %vm384 = vcmask 195584
  %v386 = vsel %vm384, %v343, 0
  %v389 = vsel %vm384, %v344, 0
  %v392 = vsel %vm384, %v345, 0
  %v395 = vsel %vm384, %v346, 0
  %v398 = vsel %vm384, %v347, 0
  %v401 = vsel %vm384, %v348, 0
  %v404 = vsel %vm384, %v349, 0
  %v407 = vsel %vm384, %v350, 0
  %v410 = vsel %vm384, %v351, 0
  %v413 = vsel %vm384, %v352, 0
  %v416 = vsel %vm384, %v353, 0
  %v419 = vsel %vm384, %v354, 0
  %v422 = vsel %vm384, %v355, 0
  %v425 = vsel %vm384, %v356, 0
  %v428 = vsel %vm384, %v357, 0
  %v431 = vsel %vm384, %v358, 0
  %v434 = vsel %vm384, %v359, 0
  %v437 = vsel %vm384, %v360, 0
  %v440 = vsel %vm384, %v361, 0
  %v443 = vsel %vm384, %v362, 0
  %v446 = vsel %vm384, %v363, 0
  %v449 = vsel %vm384, %v364, 0
  %v452 = vsel %vm384, %v365, 0
  %v455 = vsel %vm384, %v366, 0
  %v458 = vsel %vm384, %v367, 0
  %v461 = vsel %vm384, %v368, 0
  %v464 = vsel %vm384, %v369, 0
  %v467 = vsel %vm384, %v370, 0
  %v470 = vsel %vm384, %v371, 0
  %v473 = vsel %vm384, %v372, 0
  %v476 = vsel %vm384, %v373, 0
  %v479 = vsel %vm384, %v374, 0
  %vm481 = vcmask 1043456
  %v483 = vsel %vm481, %v382, 0
  %485 = vmatprep.subr.bf16.mxu0 0
  %486 = vmatpush1.bf16.msra.mxu0 %v381
  %487 = vmatprep.subr.bf16.mxu0 0
  %488 = vmatpush1.bf16.msra.mxu0 %v483
  %489 = vmatprep.subr.bf16.mxu0 0
  %490 = vmatpush1.bf16.msra.mxu0 0
  %491 = vmatprep.subr.bf16.mxu0 0
  %492 = vmatpush1.bf16.msra.mxu0 0
  %493 = vmatprep.subr.bf16.mxu0 0
  %494 = vmatpush1.bf16.msra.mxu0 0
  %495 = vmatprep.subr.bf16.mxu0 0
  %496 = vmatpush1.bf16.msra.mxu0 0
  %497 = vmatprep.subr.bf16.mxu0 0
  %498 = vmatpush1.bf16.msra.mxu0 0
  %499 = vmatprep.subr.bf16.mxu0 0
  %500 = vmatpush1.bf16.msra.mxu0 0
  %501 = vmatprep.subr.bf16.mxu0 0
  %502 = vmatpush1.bf16.msra.mxu0 0
  %503 = vmatprep.subr.bf16.mxu0 0
  %504 = vmatpush1.bf16.msra.mxu0 0
  %505 = vmatprep.subr.bf16.mxu0 0
  %506 = vmatpush1.bf16.msra.mxu0 0
  %507 = vmatprep.subr.bf16.mxu0 0
  %508 = vmatpush1.bf16.msra.mxu0 0
  %509 = vmatprep.subr.bf16.mxu0 0
  %510 = vmatpush1.bf16.msra.mxu0 0
  %511 = vmatprep.subr.bf16.mxu0 0
  %512 = vmatpush1.bf16.msra.mxu0 0
  %513 = vmatprep.subr.bf16.mxu0 0
  %514 = vmatpush1.bf16.msra.mxu0 0
  %515 = vmatprep.subr.bf16.mxu0 0
  %516 = vmatpush1.bf16.msra.mxu0 0
  %517 = vmatprep.mubr.bf16.mxu0 0
  %518 = vmatmul.mubr.bf16.gmra.mrb[0].mxu0 %v386
  %v519 = vpop.f32.mrb[0].mxu0
  %v520 = vadd.f32 0.0, %v519
  %v521 = vpop.f32.mrb[0].mxu0
  %v522 = vpop.f32.mrb[0].mxu0
  %v523 = vadd.f32 0.0, %v522
  %v524 = vpop.f32.mrb[0].mxu0
  %525 = vmatprep.mubr.bf16.mxu0 0
  %526 = vmatmul.mubr.bf16.gmra.mrb[0].mxu0 %v389
  %v527 = vpop.f32.mrb[0].mxu0
  %v528 = vadd.f32 0.0, %v527
  %v529 = vpop.f32.mrb[0].mxu0
  %v530 = vpop.f32.mrb[0].mxu0
  %v531 = vadd.f32 0.0, %v530
  %v532 = vpop.f32.mrb[0].mxu0
  %533 = vmatprep.mubr.bf16.mxu0 0
  %534 = vmatmul.mubr.bf16.gmra.mrb[0].mxu0 %v392
  %v535 = vpop.f32.mrb[0].mxu0
  %v536 = vadd.f32 0.0, %v535
  %v537 = vpop.f32.mrb[0].mxu0
  %v538 = vpop.f32.mrb[0].mxu0
  %v539 = vadd.f32 0.0, %v538
  %v540 = vpop.f32.mrb[0].mxu0
  %541 = vmatprep.mubr.bf16.mxu0 0
  %542 = vmatmul.mubr.bf16.gmra.mrb[0].mxu0 %v395
  %v543 = vpop.f32.mrb[0].mxu0
  %v544 = vadd.f32 0.0, %v543
  %v545 = vpop.f32.mrb[0].mxu0
  %v546 = vpop.f32.mrb[0].mxu0
  %v547 = vadd.f32 0.0, %v546
  %v548 = vpop.f32.mrb[0].mxu0
  %549 = vmatprep.mubr.bf16.mxu0 0
  %550 = vmatmul.mubr.bf16.gmra.mrb[0].mxu0 %v398
  %v551 = vpop.f32.mrb[0].mxu0
  %v552 = vadd.f32 0.0, %v551
  %v553 = vpop.f32.mrb[0].mxu0
  %v554 = vpop.f32.mrb[0].mxu0
  %v555 = vadd.f32 0.0, %v554
  %v556 = vpop.f32.mrb[0].mxu0
  %557 = vmatprep.mubr.bf16.mxu0 0
  %558 = vmatmul.mubr.bf16.gmra.mrb[0].mxu0 %v401
  %v559 = vpop.f32.mrb[0].mxu0
  %v560 = vadd.f32 0.0, %v559
  %v561 = vpop.f32.mrb[0].mxu0
  %v562 = vpop.f32.mrb[0].mxu0
  %v563 = vadd.f32 0.0, %v562
  %v564 = vpop.f32.mrb[0].mxu0
  %565 = vmatprep.mubr.bf16.mxu0 0
  %566 = vmatmul.mubr.bf16.gmra.mrb[0].mxu0 %v404
  %v567 = vpop.f32.mrb[0].mxu0
  %v568 = vadd.f32 0.0, %v567
  %v569 = vpop.f32.mrb[0].mxu0
  %v570 = vpop.f32.mrb[0].mxu0
  %v571 = vadd.f32 0.0, %v570
  %v572 = vpop.f32.mrb[0].mxu0
  %573 = vmatprep.mubr.bf16.mxu0 0
  %574 = vmatmul.mubr.bf16.gmra.mrb[0].mxu0 %v407
  %v575 = vpop.f32.mrb[0].mxu0
  %v576 = vadd.f32 0.0, %v575
  %v577 = vpop.f32.mrb[0].mxu0
  %v578 = vpop.f32.mrb[0].mxu0
  %v579 = vadd.f32 0.0, %v578
  %v580 = vpop.f32.mrb[0].mxu0
  %581 = vmatprep.mubr.bf16.mxu0 0
  %582 = vmatmul.mubr.bf16.gmra.mrb[0].mxu0 %v410
  %v583 = vpop.f32.mrb[0].mxu0
  %v584 = vadd.f32 0.0, %v583
  %v585 = vpop.f32.mrb[0].mxu0
  %v586 = vpop.f32.mrb[0].mxu0
  %v587 = vadd.f32 0.0, %v586
  %v588 = vpop.f32.mrb[0].mxu0
  %589 = vmatprep.mubr.bf16.mxu0 0
  %590 = vmatmul.mubr.bf16.gmra.mrb[0].mxu0 %v413
  %v591 = vpop.f32.mrb[0].mxu0
  %v592 = vadd.f32 0.0, %v591
  %v593 = vpop.f32.mrb[0].mxu0
  %v594 = vpop.f32.mrb[0].mxu0
  %v595 = vadd.f32 0.0, %v594
  %v596 = vpop.f32.mrb[0].mxu0
  %597 = vmatprep.mubr.bf16.mxu0 0
  %598 = vmatmul.mubr.bf16.gmra.mrb[0].mxu0 %v416
  %v599 = vpop.f32.mrb[0].mxu0
  %v600 = vadd.f32 0.0, %v599
  %v601 = vpop.f32.mrb[0].mxu0
  %v602 = vpop.f32.mrb[0].mxu0
  %v603 = vadd.f32 0.0, %v602
  %v604 = vpop.f32.mrb[0].mxu0
  %605 = vmatprep.mubr.bf16.mxu0 0
  %606 = vmatmul.mubr.bf16.gmra.mrb[0].mxu0 %v419
  %v607 = vpop.f32.mrb[0].mxu0
  %v608 = vadd.f32 0.0, %v607
  %v609 = vpop.f32.mrb[0].mxu0
  %v610 = vpop.f32.mrb[0].mxu0
  %v611 = vadd.f32 0.0, %v610
  %v612 = vpop.f32.mrb[0].mxu0
  %613 = vmatprep.mubr.bf16.mxu0 0
  %614 = vmatmul.mubr.bf16.gmra.mrb[0].mxu0 %v422
  %v615 = vpop.f32.mrb[0].mxu0
  %v616 = vadd.f32 0.0, %v615
  %v617 = vpop.f32.mrb[0].mxu0
  %v618 = vpop.f32.mrb[0].mxu0
  %v619 = vadd.f32 0.0, %v618
  %v620 = vpop.f32.mrb[0].mxu0
  %621 = vmatprep.mubr.bf16.mxu0 0
  %622 = vmatmul.mubr.bf16.gmra.mrb[0].mxu0 %v425
  %v623 = vpop.f32.mrb[0].mxu0
  %v624 = vadd.f32 0.0, %v623
  %v625 = vpop.f32.mrb[0].mxu0
  %v626 = vpop.f32.mrb[0].mxu0
  %v627 = vadd.f32 0.0, %v626
  %v628 = vpop.f32.mrb[0].mxu0
  %629 = vmatprep.mubr.bf16.mxu0 0
  %630 = vmatmul.mubr.bf16.gmra.mrb[0].mxu0 %v428
  %v631 = vpop.f32.mrb[0].mxu0
  %v632 = vadd.f32 0.0, %v631
  %v633 = vpop.f32.mrb[0].mxu0
  %v634 = vpop.f32.mrb[0].mxu0
  %v635 = vadd.f32 0.0, %v634
  %v636 = vpop.f32.mrb[0].mxu0
  %637 = vmatprep.mubr.bf16.mxu0 0
  %638 = vmatmul.mubr.bf16.gmra.mrb[0].mxu0 %v431
  %v639 = vpop.f32.mrb[0].mxu0
  %v640 = vadd.f32 0.0, %v639
  %v641 = vpop.f32.mrb[0].mxu0
  %v642 = vpop.f32.mrb[0].mxu0
  %v643 = vadd.f32 0.0, %v642
  %v644 = vpop.f32.mrb[0].mxu0
  %645 = vmatprep.mubr.bf16.mxu0 0
  %646 = vmatmul.mubr.bf16.gmra.mrb[0].mxu0 %v434
  %v647 = vpop.f32.mrb[0].mxu0
  %v648 = vadd.f32 0.0, %v647
  %v649 = vpop.f32.mrb[0].mxu0
  %v650 = vpop.f32.mrb[0].mxu0
  %v651 = vadd.f32 0.0, %v650
  %v652 = vpop.f32.mrb[0].mxu0
  %653 = vmatprep.mubr.bf16.mxu0 0
  %654 = vmatmul.mubr.bf16.gmra.mrb[0].mxu0 %v437
  %v655 = vpop.f32.mrb[0].mxu0
  %v656 = vadd.f32 0.0, %v655
  %v657 = vpop.f32.mrb[0].mxu0
  %v658 = vpop.f32.mrb[0].mxu0
  %v659 = vadd.f32 0.0, %v658
  %v660 = vpop.f32.mrb[0].mxu0
  %661 = vmatprep.mubr.bf16.mxu0 0
  %662 = vmatmul.mubr.bf16.gmra.mrb[0].mxu0 %v440
  %v663 = vpop.f32.mrb[0].mxu0
  %v664 = vadd.f32 0.0, %v663
  %v665 = vpop.f32.mrb[0].mxu0
  %v666 = vpop.f32.mrb[0].mxu0
  %v667 = vadd.f32 0.0, %v666
  %v668 = vpop.f32.mrb[0].mxu0
  %669 = vmatprep.mubr.bf16.mxu0 0
  %670 = vmatmul.mubr.bf16.gmra.mrb[0].mxu0 %v443
  %v671 = vpop.f32.mrb[0].mxu0
  %v672 = vadd.f32 0.0, %v671
  %v673 = vpop.f32.mrb[0].mxu0
  %v674 = vpop.f32.mrb[0].mxu0
  %v675 = vadd.f32 0.0, %v674
  %v676 = vpop.f32.mrb[0].mxu0
  %677 = vmatprep.mubr.bf16.mxu0 0
  %678 = vmatmul.mubr.bf16.gmra.mrb[0].mxu0 %v446
  %v679 = vpop.f32.mrb[0].mxu0
  %v680 = vadd.f32 0.0, %v679
  %v681 = vpop.f32.mrb[0].mxu0
  %v682 = vpop.f32.mrb[0].mxu0
  %v683 = vadd.f32 0.0, %v682
  %v684 = vpop.f32.mrb[0].mxu0
  %685 = vmatprep.mubr.bf16.mxu0 0
  %686 = vmatmul.mubr.bf16.gmra.mrb[0].mxu0 %v449
  %v687 = vpop.f32.mrb[0].mxu0
  %v688 = vadd.f32 0.0, %v687
  %v689 = vpop.f32.mrb[0].mxu0
  %v690 = vpop.f32.mrb[0].mxu0
  %v691 = vadd.f32 0.0, %v690
  %v692 = vpop.f32.mrb[0].mxu0
  %693 = vmatprep.mubr.bf16.mxu0 0
  %694 = vmatmul.mubr.bf16.gmra.mrb[0].mxu0 %v452
  %v695 = vpop.f32.mrb[0].mxu0
  %v696 = vadd.f32 0.0, %v695
  %v697 = vpop.f32.mrb[0].mxu0
  %v698 = vpop.f32.mrb[0].mxu0
  %v699 = vadd.f32 0.0, %v698
  %v700 = vpop.f32.mrb[0].mxu0
  %701 = vmatprep.mubr.bf16.mxu0 0
  %702 = vmatmul.mubr.bf16.gmra.mrb[0].mxu0 %v455
  %v703 = vpop.f32.mrb[0].mxu0
  %v704 = vadd.f32 0.0, %v703
  %v705 = vpop.f32.mrb[0].mxu0
  %v706 = vpop.f32.mrb[0].mxu0
  %v707 = vadd.f32 0.0, %v706
  %v708 = vpop.f32.mrb[0].mxu0
  %709 = vmatprep.mubr.bf16.mxu0 0
  %710 = vmatmul.mubr.bf16.gmra.mrb[0].mxu0 %v458
  %v711 = vpop.f32.mrb[0].mxu0
  %v712 = vadd.f32 0.0, %v711
  %v713 = vpop.f32.mrb[0].mxu0
  %v714 = vpop.f32.mrb[0].mxu0
  %v715 = vadd.f32 0.0, %v714
  %v716 = vpop.f32.mrb[0].mxu0
  %717 = vmatprep.mubr.bf16.mxu0 0
  %718 = vmatmul.mubr.bf16.gmra.mrb[0].mxu0 %v461
  %v719 = vpop.f32.mrb[0].mxu0
  %v720 = vadd.f32 0.0, %v719
  %v721 = vpop.f32.mrb[0].mxu0
  %v722 = vpop.f32.mrb[0].mxu0
  %v723 = vadd.f32 0.0, %v722
  %v724 = vpop.f32.mrb[0].mxu0
  %725 = vmatprep.mubr.bf16.mxu0 0
  %726 = vmatmul.mubr.bf16.gmra.mrb[0].mxu0 %v464
  %v727 = vpop.f32.mrb[0].mxu0
  %v728 = vadd.f32 0.0, %v727
  %v729 = vpop.f32.mrb[0].mxu0
  %v730 = vpop.f32.mrb[0].mxu0
  %v731 = vadd.f32 0.0, %v730
  %v732 = vpop.f32.mrb[0].mxu0
  %733 = vmatprep.mubr.bf16.mxu0 0
  %734 = vmatmul.mubr.bf16.gmra.mrb[0].mxu0 %v467
  %v735 = vpop.f32.mrb[0].mxu0
  %v736 = vadd.f32 0.0, %v735
  %v737 = vpop.f32.mrb[0].mxu0
  %v738 = vpop.f32.mrb[0].mxu0
  %v739 = vadd.f32 0.0, %v738
  %v740 = vpop.f32.mrb[0].mxu0
  %741 = vmatprep.mubr.bf16.mxu0 0
  %742 = vmatmul.mubr.bf16.gmra.mrb[0].mxu0 %v470
  %v743 = vpop.f32.mrb[0].mxu0
  %v744 = vadd.f32 0.0, %v743
  %v745 = vpop.f32.mrb[0].mxu0
  %v746 = vpop.f32.mrb[0].mxu0
  %v747 = vadd.f32 0.0, %v746
  %v748 = vpop.f32.mrb[0].mxu0
  %749 = vmatprep.mubr.bf16.mxu0 0
  %750 = vmatmul.mubr.bf16.gmra.mrb[0].mxu0 %v473
  %v751 = vpop.f32.mrb[0].mxu0
  %v752 = vadd.f32 0.0, %v751
  %v753 = vpop.f32.mrb[0].mxu0
  %v754 = vpop.f32.mrb[0].mxu0
  %v755 = vadd.f32 0.0, %v754
  %v756 = vpop.f32.mrb[0].mxu0
  %757 = vmatprep.mubr.bf16.mxu0 0
  %758 = vmatmul.mubr.bf16.gmra.mrb[0].mxu0 %v476
  %v759 = vpop.f32.mrb[0].mxu0
  %v760 = vadd.f32 0.0, %v759
  %v761 = vpop.f32.mrb[0].mxu0
  %v762 = vpop.f32.mrb[0].mxu0
  %v763 = vadd.f32 0.0, %v762
  %v764 = vpop.f32.mrb[0].mxu0
  %765 = vmatprep.mubr.bf16.mxu0 0
  %766 = vmatmul.mubr.bf16.gmra.mrb[0].mxu0 %v479
  %v767 = vpop.f32.mrb[0].mxu0
  %v768 = vadd.f32 0.0, %v767
  %v769 = vpop.f32.mrb[0].mxu0
  %v770 = vpop.f32.mrb[0].mxu0
  %v771 = vadd.f32 0.0, %v770
  %v772 = vpop.f32.mrb[0].mxu0
  %773 = vdwg.mxu0
  %v774 = vadd.f32 %v84, %v520
  %v775 = vadd.f32 %v85, %v523
  %v776 = vadd.f32 %v86, %v528
  %v777 = vadd.f32 %v87, %v531
  %v778 = vadd.f32 %v88, %v536
  %v779 = vadd.f32 %v89, %v539
  %v780 = vadd.f32 %v90, %v544
  %v781 = vadd.f32 %v91, %v547
  %v782 = vadd.f32 %v92, %v552
  %v783 = vadd.f32 %v93, %v555
  %v784 = vadd.f32 %v94, %v560
  %v785 = vadd.f32 %v95, %v563
  %v786 = vadd.f32 %v96, %v568
  %v787 = vadd.f32 %v97, %v571
  %v788 = vadd.f32 %v98, %v576
  %v789 = vadd.f32 %v99, %v579
  %v790 = vadd.f32 %v100, %v584
  %v791 = vadd.f32 %v101, %v587
  %v792 = vadd.f32 %v102, %v592
  %v793 = vadd.f32 %v103, %v595
  %v794 = vadd.f32 %v104, %v600
  %v795 = vadd.f32 %v105, %v603
  %v796 = vadd.f32 %v106, %v608
  %v797 = vadd.f32 %v107, %v611
  %v798 = vadd.f32 %v108, %v616
  %v799 = vadd.f32 %v109, %v619
  %v800 = vadd.f32 %v110, %v624
  %v801 = vadd.f32 %v111, %v627
  %v802 = vadd.f32 %v112, %v632
  %v803 = vadd.f32 %v113, %v635
  %v804 = vadd.f32 %v114, %v640
  %v805 = vadd.f32 %v115, %v643
  %v806 = vadd.f32 %v116, %v648
  %v807 = vadd.f32 %v117, %v651
  %v808 = vadd.f32 %v118, %v656
  %v809 = vadd.f32 %v119, %v659
  %v810 = vadd.f32 %v120, %v664
  %v811 = vadd.f32 %v121, %v667
  %v812 = vadd.f32 %v122, %v672
  %v813 = vadd.f32 %v123, %v675
  %v814 = vadd.f32 %v124, %v680
  %v815 = vadd.f32 %v125, %v683
  %v816 = vadd.f32 %v126, %v688
  %v817 = vadd.f32 %v127, %v691
  %v818 = vadd.f32 %v128, %v696
  %v819 = vadd.f32 %v129, %v699
  %v820 = vadd.f32 %v130, %v704
  %v821 = vadd.f32 %v131, %v707
  %v822 = vadd.f32 %v132, %v712
  %v823 = vadd.f32 %v133, %v715
  %v824 = vadd.f32 %v134, %v720
  %v825 = vadd.f32 %v135, %v723
  %v826 = vadd.f32 %v136, %v728
  %v827 = vadd.f32 %v137, %v731
  %v828 = vadd.f32 %v138, %v736
  %v829 = vadd.f32 %v139, %v739
  %v830 = vadd.f32 %v140, %v744
  %v831 = vadd.f32 %v141, %v747
  %v832 = vadd.f32 %v142, %v752
  %v833 = vadd.f32 %v143, %v755
  %v834 = vadd.f32 %v144, %v760
  %v835 = vadd.f32 %v145, %v763
  %v836 = vadd.f32 %v146, %v768
  %v837 = vadd.f32 %v147, %v771
  %vm838 = vcmask 64512
  %839 = vst.msk [vmem:[#allocation2] sm:$0xff] %vm838, %v774
  %840 = vst.msk [vmem:[#allocation2 + $0x8] sm:$0xff] %vm838, %v775
  %841 = vst.msk [vmem:[#allocation2 + $0x10] sm:$0xff] %vm838, %v776
  %842 = vst.msk [vmem:[#allocation2 + $0x18] sm:$0xff] %vm838, %v777
  %843 = vst.msk [vmem:[#allocation2 + $0x20] sm:$0xff] %vm838, %v778
  %844 = vst.msk [vmem:[#allocation2 + $0x28] sm:$0xff] %vm838, %v779
  %845 = vst.msk [vmem:[#allocation2 + $0x30] sm:$0xff] %vm838, %v780
  %846 = vst.msk [vmem:[#allocation2 + $0x38] sm:$0xff] %vm838, %v781
  %847 = vst.msk [vmem:[#allocation2 + $0x40] sm:$0xff] %vm838, %v782
  %848 = vst.msk [vmem:[#allocation2 + $0x48] sm:$0xff] %vm838, %v783
  %849 = vst.msk [vmem:[#allocation2 + $0x50] sm:$0xff] %vm838, %v784
  %850 = vst.msk [vmem:[#allocation2 + $0x58] sm:$0xff] %vm838, %v785
  %851 = vst.msk [vmem:[#allocation2 + $0x60] sm:$0xff] %vm838, %v786
  %852 = vst.msk [vmem:[#allocation2 + $0x68] sm:$0xff] %vm838, %v787
  %853 = vst.msk [vmem:[#allocation2 + $0x70] sm:$0xff] %vm838, %v788
  %854 = vst.msk [vmem:[#allocation2 + $0x78] sm:$0xff] %vm838, %v789
  %855 = vst.msk [vmem:[#allocation2 + $0x80] sm:$0xff] %vm838, %v790
  %856 = vst.msk [vmem:[#allocation2 + $0x88] sm:$0xff] %vm838, %v791
  %857 = vst.msk [vmem:[#allocation2 + $0x90] sm:$0xff] %vm838, %v792
  %858 = vst.msk [vmem:[#allocation2 + $0x98] sm:$0xff] %vm838, %v793
  %859 = vst.msk [vmem:[#allocation2 + $0xa0] sm:$0xff] %vm838, %v794
  %860 = vst.msk [vmem:[#allocation2 + $0xa8] sm:$0xff] %vm838, %v795
  %861 = vst.msk [vmem:[#allocation2 + $0xb0] sm:$0xff] %vm838, %v796
  %862 = vst.msk [vmem:[#allocation2 + $0xb8] sm:$0xff] %vm838, %v797
  %863 = vst.msk [vmem:[#allocation2 + $0xc0] sm:$0xff] %vm838, %v798
  %864 = vst.msk [vmem:[#allocation2 + $0xc8] sm:$0xff] %vm838, %v799
  %865 = vst.msk [vmem:[#allocation2 + $0xd0] sm:$0xff] %vm838, %v800
  %866 = vst.msk [vmem:[#allocation2 + $0xd8] sm:$0xff] %vm838, %v801
  %867 = vst.msk [vmem:[#allocation2 + $0xe0] sm:$0xff] %vm838, %v802
  %868 = vst.msk [vmem:[#allocation2 + $0xe8] sm:$0xff] %vm838, %v803
  %869 = vst.msk [vmem:[#allocation2 + $0xf0] sm:$0xff] %vm838, %v804
  %870 = vst.msk [vmem:[#allocation2 + $0xf8] sm:$0xff] %vm838, %v805
  %871 = vst.msk [vmem:[#allocation2 + $0x100] sm:$0xff] %vm838, %v806
  %872 = vst.msk [vmem:[#allocation2 + $0x108] sm:$0xff] %vm838, %v807
  %873 = vst.msk [vmem:[#allocation2 + $0x110] sm:$0xff] %vm838, %v808
  %874 = vst.msk [vmem:[#allocation2 + $0x118] sm:$0xff] %vm838, %v809
  %875 = vst.msk [vmem:[#allocation2 + $0x120] sm:$0xff] %vm838, %v810
  %876 = vst.msk [vmem:[#allocation2 + $0x128] sm:$0xff] %vm838, %v811
  %877 = vst.msk [vmem:[#allocation2 + $0x130] sm:$0xff] %vm838, %v812
  %878 = vst.msk [vmem:[#allocation2 + $0x138] sm:$0xff] %vm838, %v813
  %879 = vst.msk [vmem:[#allocation2 + $0x140] sm:$0xff] %vm838, %v814
  %880 = vst.msk [vmem:[#allocation2 + $0x148] sm:$0xff] %vm838, %v815
  %881 = vst.msk [vmem:[#allocation2 + $0x150] sm:$0xff] %vm838, %v816
  %882 = vst.msk [vmem:[#allocation2 + $0x158] sm:$0xff] %vm838, %v817
  %883 = vst.msk [vmem:[#allocation2 + $0x160] sm:$0xff] %vm838, %v818
  %884 = vst.msk [vmem:[#allocation2 + $0x168] sm:$0xff] %vm838, %v819
  %885 = vst.msk [vmem:[#allocation2 + $0x170] sm:$0xff] %vm838, %v820
  %886 = vst.msk [vmem:[#allocation2 + $0x178] sm:$0xff] %vm838, %v821
  %887 = vst.msk [vmem:[#allocation2 + $0x180] sm:$0xff] %vm838, %v822
  %888 = vst.msk [vmem:[#allocation2 + $0x188] sm:$0xff] %vm838, %v823
  %889 = vst.msk [vmem:[#allocation2 + $0x190] sm:$0xff] %vm838, %v824
  %890 = vst.msk [vmem:[#allocation2 + $0x198] sm:$0xff] %vm838, %v825
  %891 = vst.msk [vmem:[#allocation2 + $0x1a0] sm:$0xff] %vm838, %v826
  %892 = vst.msk [vmem:[#allocation2 + $0x1a8] sm:$0xff] %vm838, %v827
  %893 = vst.msk [vmem:[#allocation2 + $0x1b0] sm:$0xff] %vm838, %v828
  %894 = vst.msk [vmem:[#allocation2 + $0x1b8] sm:$0xff] %vm838, %v829
  %895 = vst.msk [vmem:[#allocation2 + $0x1c0] sm:$0xff] %vm838, %v830
  %896 = vst.msk [vmem:[#allocation2 + $0x1c8] sm:$0xff] %vm838, %v831
  %897 = vst.msk [vmem:[#allocation2 + $0x1d0] sm:$0xff] %vm838, %v832
  %898 = vst.msk [vmem:[#allocation2 + $0x1d8] sm:$0xff] %vm838, %v833
  %899 = vst.msk [vmem:[#allocation2 + $0x1e0] sm:$0xff] %vm838, %v834
  %900 = vst.msk [vmem:[#allocation2 + $0x1e8] sm:$0xff] %vm838, %v835
  %901 = vst.msk [vmem:[#allocation2 + $0x1f0] sm:$0xff] %vm838, %v836
  %902 = vst.msk [vmem:[#allocation2 + $0x1f8] sm:$0xff] %vm838, %v837
  // Predicated region
  $region18: #{tpu_custom_call.1} parent=0 // pred_check
    %p903 = pneg %p15
  $region19: #{tpu_custom_call.1} parent=0 // pred_check_branch
    %905 = sbr.rel (%p903) target = $region21
  $region20: #{tpu_custom_call.1} parent=0 // pred_region
    %v906 = vld [vmem:[#allocation2] sm:$0xff]
    %v907 = vld [vmem:[#allocation2 + $0x8] sm:$0xff]
    %v908 = vld [vmem:[#allocation2 + $0x10] sm:$0xff]
    %v909 = vld [vmem:[#allocation2 + $0x18] sm:$0xff]
    %v910 = vld [vmem:[#allocation2 + $0x20] sm:$0xff]
    %v911 = vld [vmem:[#allocation2 + $0x28] sm:$0xff]
    %v912 = vld [vmem:[#allocation2 + $0x30] sm:$0xff]
    %v913 = vld [vmem:[#allocation2 + $0x38] sm:$0xff]
    %v914 = vld [vmem:[#allocation2 + $0x40] sm:$0xff]
    %v915 = vld [vmem:[#allocation2 + $0x48] sm:$0xff]
    %v916 = vld [vmem:[#allocation2 + $0x50] sm:$0xff]
    %v917 = vld [vmem:[#allocation2 + $0x58] sm:$0xff]
    %v918 = vld [vmem:[#allocation2 + $0x60] sm:$0xff]
    %v919 = vld [vmem:[#allocation2 + $0x68] sm:$0xff]
    %v920 = vld [vmem:[#allocation2 + $0x70] sm:$0xff]
    %v921 = vld [vmem:[#allocation2 + $0x78] sm:$0xff]
    %v922 = vld [vmem:[#allocation2 + $0x80] sm:$0xff]
    %v923 = vld [vmem:[#allocation2 + $0x88] sm:$0xff]
    %v924 = vld [vmem:[#allocation2 + $0x90] sm:$0xff]
    %v925 = vld [vmem:[#allocation2 + $0x98] sm:$0xff]
    %v926 = vld [vmem:[#allocation2 + $0xa0] sm:$0xff]
    %v927 = vld [vmem:[#allocation2 + $0xa8] sm:$0xff]
    %v928 = vld [vmem:[#allocation2 + $0xb0] sm:$0xff]
    %v929 = vld [vmem:[#allocation2 + $0xb8] sm:$0xff]
    %v930 = vld [vmem:[#allocation2 + $0xc0] sm:$0xff]
    %v931 = vld [vmem:[#allocation2 + $0xc8] sm:$0xff]
    %v932 = vld [vmem:[#allocation2 + $0xd0] sm:$0xff]
    %v933 = vld [vmem:[#allocation2 + $0xd8] sm:$0xff]
    %v934 = vld [vmem:[#allocation2 + $0xe0] sm:$0xff]
    %v935 = vld [vmem:[#allocation2 + $0xe8] sm:$0xff]
    %v936 = vld [vmem:[#allocation2 + $0xf0] sm:$0xff]
    %v937 = vld [vmem:[#allocation2 + $0xf8] sm:$0xff]
    %v938 = vld [vmem:[#allocation2 + $0x100] sm:$0xff]
    %v939 = vld [vmem:[#allocation2 + $0x108] sm:$0xff]
    %v940 = vld [vmem:[#allocation2 + $0x110] sm:$0xff]
    %v941 = vld [vmem:[#allocation2 + $0x118] sm:$0xff]
    %v942 = vld [vmem:[#allocation2 + $0x120] sm:$0xff]
    %v943 = vld [vmem:[#allocation2 + $0x128] sm:$0xff]
    %v944 = vld [vmem:[#allocation2 + $0x130] sm:$0xff]
    %v945 = vld [vmem:[#allocation2 + $0x138] sm:$0xff]
    %v946 = vld [vmem:[#allocation2 + $0x140] sm:$0xff]
    %v947 = vld [vmem:[#allocation2 + $0x148] sm:$0xff]
    %v948 = vld [vmem:[#allocation2 + $0x150] sm:$0xff]
    %v949 = vld [vmem:[#allocation2 + $0x158] sm:$0xff]
    %v950 = vld [vmem:[#allocation2 + $0x160] sm:$0xff]
    %v951 = vld [vmem:[#allocation2 + $0x168] sm:$0xff]
    %v952 = vld [vmem:[#allocation2 + $0x170] sm:$0xff]
    %v953 = vld [vmem:[#allocation2 + $0x178] sm:$0xff]
    %v954 = vld [vmem:[#allocation2 + $0x180] sm:$0xff]
    %v955 = vld [vmem:[#allocation2 + $0x188] sm:$0xff]
    %v956 = vld [vmem:[#allocation2 + $0x190] sm:$0xff]
    %v957 = vld [vmem:[#allocation2 + $0x198] sm:$0xff]
    %v958 = vld [vmem:[#allocation2 + $0x1a0] sm:$0xff]
    %v959 = vld [vmem:[#allocation2 + $0x1a8] sm:$0xff]
    %v960 = vld [vmem:[#allocation2 + $0x1b0] sm:$0xff]
    %v961 = vld [vmem:[#allocation2 + $0x1b8] sm:$0xff]
    %v962 = vld [vmem:[#allocation2 + $0x1c0] sm:$0xff]
    %v963 = vld [vmem:[#allocation2 + $0x1c8] sm:$0xff]
    %v964 = vld [vmem:[#allocation2 + $0x1d0] sm:$0xff]
    %v965 = vld [vmem:[#allocation2 + $0x1d8] sm:$0xff]
    %v966 = vld [vmem:[#allocation2 + $0x1e0] sm:$0xff]
    %v967 = vld [vmem:[#allocation2 + $0x1e8] sm:$0xff]
    %v968 = vld [vmem:[#allocation2 + $0x1f0] sm:$0xff]
    %v969 = vld [vmem:[#allocation2 + $0x1f8] sm:$0xff]
    %v970 = vld [vmem:[%s2] sm:$0x1]
    %v972 = vlaneseq
    %v973 = vshrl.u32 %v972, 7
    %v974 = vsub.s32 0, %v973
    %v975 = vrot.slane %v970, %v974
    %v977 = vadd.f32 %v906, %v975
    %v978 = vadd.f32 %v907, %v975
    %v979 = vadd.f32 %v908, %v975
    %v980 = vadd.f32 %v909, %v975
    %v981 = vadd.f32 %v910, %v975
    %v982 = vadd.f32 %v911, %v975
    %v983 = vadd.f32 %v912, %v975
    %v984 = vadd.f32 %v913, %v975
    %v985 = vadd.f32 %v914, %v975
    %v986 = vadd.f32 %v915, %v975
    %v987 = vadd.f32 %v916, %v975
    %v988 = vadd.f32 %v917, %v975
    %v989 = vadd.f32 %v918, %v975
    %v990 = vadd.f32 %v919, %v975
    %v991 = vadd.f32 %v920, %v975
    %v992 = vadd.f32 %v921, %v975
    %v993 = vadd.f32 %v922, %v975
    %v994 = vadd.f32 %v923, %v975
    %v995 = vadd.f32 %v924, %v975
    %v996 = vadd.f32 %v925, %v975
    %v997 = vadd.f32 %v926, %v975
    %v998 = vadd.f32 %v927, %v975
    %v999 = vadd.f32 %v928, %v975
    %v1000 = vadd.f32 %v929, %v975
    %v1001 = vadd.f32 %v930, %v975
    %v1002 = vadd.f32 %v931, %v975
    %v1003 = vadd.f32 %v932, %v975
    %v1004 = vadd.f32 %v933, %v975
    %v1005 = vadd.f32 %v934, %v975
    %v1006 = vadd.f32 %v935, %v975
    %v1007 = vadd.f32 %v936, %v975
    %v1008 = vadd.f32 %v937, %v975
    %v1009 = vadd.f32 %v938, %v975
    %v1010 = vadd.f32 %v939, %v975
    %v1011 = vadd.f32 %v940, %v975
    %v1012 = vadd.f32 %v941, %v975
    %v1013 = vadd.f32 %v942, %v975
    %v1014 = vadd.f32 %v943, %v975
    %v1015 = vadd.f32 %v944, %v975
    %v1016 = vadd.f32 %v945, %v975
    %v1017 = vadd.f32 %v946, %v975
    %v1018 = vadd.f32 %v947, %v975
    %v1019 = vadd.f32 %v948, %v975
    %v1020 = vadd.f32 %v949, %v975
    %v1021 = vadd.f32 %v950, %v975
    %v1022 = vadd.f32 %v951, %v975
    %v1023 = vadd.f32 %v952, %v975
    %v1024 = vadd.f32 %v953, %v975
    %v1025 = vadd.f32 %v954, %v975
    %v1026 = vadd.f32 %v955, %v975
    %v1027 = vadd.f32 %v956, %v975
    %v1028 = vadd.f32 %v957, %v975
    %v1029 = vadd.f32 %v958, %v975
    %v1030 = vadd.f32 %v959, %v975
    %v1031 = vadd.f32 %v960, %v975
    %v1032 = vadd.f32 %v961, %v975
    %v1033 = vadd.f32 %v962, %v975
    %v1034 = vadd.f32 %v963, %v975
    %v1035 = vadd.f32 %v964, %v975
    %v1036 = vadd.f32 %v965, %v975
    %v1037 = vadd.f32 %v966, %v975
    %v1038 = vadd.f32 %v967, %v975
    %v1039 = vadd.f32 %v968, %v975
    %v1040 = vadd.f32 %v969, %v975
    %v1041 = vmax.f32 %v977, 0.0
    %v1042 = vmax.f32 %v978, 0.0
    %v1043 = vmax.f32 %v979, 0.0
    %v1044 = vmax.f32 %v980, 0.0
    %v1045 = vmax.f32 %v981, 0.0
    %v1046 = vmax.f32 %v982, 0.0
    %v1047 = vmax.f32 %v983, 0.0
    %v1048 = vmax.f32 %v984, 0.0
    %v1049 = vmax.f32 %v985, 0.0
    %v1050 = vmax.f32 %v986, 0.0
    %v1051 = vmax.f32 %v987, 0.0
    %v1052 = vmax.f32 %v988, 0.0
    %v1053 = vmax.f32 %v989, 0.0
    %v1054 = vmax.f32 %v990, 0.0
    %v1055 = vmax.f32 %v991, 0.0
    %v1056 = vmax.f32 %v992, 0.0
    %v1057 = vmax.f32 %v993, 0.0
    %v1058 = vmax.f32 %v994, 0.0
    %v1059 = vmax.f32 %v995, 0.0
    %v1060 = vmax.f32 %v996, 0.0
    %v1061 = vmax.f32 %v997, 0.0
    %v1062 = vmax.f32 %v998, 0.0
    %v1063 = vmax.f32 %v999, 0.0
    %v1064 = vmax.f32 %v1000, 0.0
    %v1065 = vmax.f32 %v1001, 0.0
    %v1066 = vmax.f32 %v1002, 0.0
    %v1067 = vmax.f32 %v1003, 0.0
    %v1068 = vmax.f32 %v1004, 0.0
    %v1069 = vmax.f32 %v1005, 0.0
    %v1070 = vmax.f32 %v1006, 0.0
    %v1071 = vmax.f32 %v1007, 0.0
    %v1072 = vmax.f32 %v1008, 0.0
    %v1073 = vmax.f32 %v1009, 0.0
    %v1074 = vmax.f32 %v1010, 0.0
    %v1075 = vmax.f32 %v1011, 0.0
    %v1076 = vmax.f32 %v1012, 0.0
    %v1077 = vmax.f32 %v1013, 0.0
    %v1078 = vmax.f32 %v1014, 0.0
    %v1079 = vmax.f32 %v1015, 0.0
    %v1080 = vmax.f32 %v1016, 0.0
    %v1081 = vmax.f32 %v1017, 0.0
    %v1082 = vmax.f32 %v1018, 0.0
    %v1083 = vmax.f32 %v1019, 0.0
    %v1084 = vmax.f32 %v1020, 0.0
    %v1085 = vmax.f32 %v1021, 0.0
    %v1086 = vmax.f32 %v1022, 0.0
    %v1087 = vmax.f32 %v1023, 0.0
    %v1088 = vmax.f32 %v1024, 0.0
    %v1089 = vmax.f32 %v1025, 0.0
    %v1090 = vmax.f32 %v1026, 0.0
    %v1091 = vmax.f32 %v1027, 0.0
    %v1092 = vmax.f32 %v1028, 0.0
    %v1093 = vmax.f32 %v1029, 0.0
    %v1094 = vmax.f32 %v1030, 0.0
    %v1095 = vmax.f32 %v1031, 0.0
    %v1096 = vmax.f32 %v1032, 0.0
    %v1097 = vmax.f32 %v1033, 0.0
    %v1098 = vmax.f32 %v1034, 0.0
    %v1099 = vmax.f32 %v1035, 0.0
    %v1100 = vmax.f32 %v1036, 0.0
    %v1101 = vmax.f32 %v1037, 0.0
    %v1102 = vmax.f32 %v1038, 0.0
    %v1103 = vmax.f32 %v1039, 0.0
    %v1104 = vmax.f32 %v1040, 0.0
    %v1105 = vpack.c.bf16 %v1042, %v1041
    %v1106 = vpack.c.bf16 %v1044, %v1043
    %v1107 = vpack.c.bf16 %v1046, %v1045
    %v1108 = vpack.c.bf16 %v1048, %v1047
    %v1109 = vpack.c.bf16 %v1050, %v1049
    %v1110 = vpack.c.bf16 %v1052, %v1051
    %v1111 = vpack.c.bf16 %v1054, %v1053
    %v1112 = vpack.c.bf16 %v1056, %v1055
    %v1113 = vpack.c.bf16 %v1058, %v1057
    %v1114 = vpack.c.bf16 %v1060, %v1059
    %v1115 = vpack.c.bf16 %v1062, %v1061
    %v1116 = vpack.c.bf16 %v1064, %v1063
    %v1117 = vpack.c.bf16 %v1066, %v1065
    %v1118 = vpack.c.bf16 %v1068, %v1067
    %v1119 = vpack.c.bf16 %v1070, %v1069
    %v1120 = vpack.c.bf16 %v1072, %v1071
    %v1121 = vpack.c.bf16 %v1074, %v1073
    %v1122 = vpack.c.bf16 %v1076, %v1075
    %v1123 = vpack.c.bf16 %v1078, %v1077
    %v1124 = vpack.c.bf16 %v1080, %v1079
    %v1125 = vpack.c.bf16 %v1082, %v1081
    %v1126 = vpack.c.bf16 %v1084, %v1083
    %v1127 = vpack.c.bf16 %v1086, %v1085
    %v1128 = vpack.c.bf16 %v1088, %v1087
    %v1129 = vpack.c.bf16 %v1090, %v1089
    %v1130 = vpack.c.bf16 %v1092, %v1091
    %v1131 = vpack.c.bf16 %v1094, %v1093
    %v1132 = vpack.c.bf16 %v1096, %v1095
    %v1133 = vpack.c.bf16 %v1098, %v1097
    %v1134 = vpack.c.bf16 %v1100, %v1099
    %v1135 = vpack.c.bf16 %v1102, %v1101
    %v1136 = vpack.c.bf16 %v1104, %v1103
    %v1169 = vunpack.c.l.b16 %v1105
    %v1170 = vunpack.c.h.b16 %v1105
    %v1171 = vunpack.c.l.b16 %v1106
    %v1172 = vunpack.c.h.b16 %v1106
    %v1173 = vunpack.c.l.b16 %v1107
    %v1174 = vunpack.c.h.b16 %v1107
    %v1175 = vunpack.c.l.b16 %v1108
    %v1176 = vunpack.c.h.b16 %v1108
    %v1177 = vunpack.c.l.b16 %v1109
    %v1178 = vunpack.c.h.b16 %v1109
    %v1179 = vunpack.c.l.b16 %v1110
    %v1180 = vunpack.c.h.b16 %v1110
    %v1181 = vunpack.c.l.b16 %v1111
    %v1182 = vunpack.c.h.b16 %v1111
    %v1183 = vunpack.c.l.b16 %v1112
    %v1184 = vunpack.c.h.b16 %v1112
    %v1185 = vunpack.c.l.b16 %v1113
    %v1186 = vunpack.c.h.b16 %v1113
    %v1187 = vunpack.c.l.b16 %v1114
    %v1188 = vunpack.c.h.b16 %v1114
    %v1189 = vunpack.c.l.b16 %v1115
    %v1190 = vunpack.c.h.b16 %v1115
    %v1191 = vunpack.c.l.b16 %v1116
    %v1192 = vunpack.c.h.b16 %v1116
    %v1193 = vunpack.c.l.b16 %v1117
    %v1194 = vunpack.c.h.b16 %v1117
    %v1195 = vunpack.c.l.b16 %v1118
    %v1196 = vunpack.c.h.b16 %v1118
    %v1197 = vunpack.c.l.b16 %v1119
    %v1198 = vunpack.c.h.b16 %v1119
    %v1199 = vunpack.c.l.b16 %v1120
    %v1200 = vunpack.c.h.b16 %v1120
    %v1201 = vunpack.c.l.b16 %v1121
    %v1202 = vunpack.c.h.b16 %v1121
    %v1203 = vunpack.c.l.b16 %v1122
    %v1204 = vunpack.c.h.b16 %v1122
    %v1205 = vunpack.c.l.b16 %v1123
    %v1206 = vunpack.c.h.b16 %v1123
    %v1207 = vunpack.c.l.b16 %v1124
    %v1208 = vunpack.c.h.b16 %v1124
    %v1209 = vunpack.c.l.b16 %v1125
    %v1210 = vunpack.c.h.b16 %v1125
    %v1211 = vunpack.c.l.b16 %v1126
    %v1212 = vunpack.c.h.b16 %v1126
    %v1213 = vunpack.c.l.b16 %v1127
    %v1214 = vunpack.c.h.b16 %v1127
    %v1215 = vunpack.c.l.b16 %v1128
    %v1216 = vunpack.c.h.b16 %v1128
    %v1217 = vunpack.c.l.b16 %v1129
    %v1218 = vunpack.c.h.b16 %v1129
    %v1219 = vunpack.c.l.b16 %v1130
    %v1220 = vunpack.c.h.b16 %v1130
    %v1221 = vunpack.c.l.b16 %v1131
    %v1222 = vunpack.c.h.b16 %v1131
    %v1223 = vunpack.c.l.b16 %v1132
    %v1224 = vunpack.c.h.b16 %v1132
    %v1225 = vunpack.c.l.b16 %v1133
    %v1226 = vunpack.c.h.b16 %v1133
    %v1227 = vunpack.c.l.b16 %v1134
    %v1228 = vunpack.c.h.b16 %v1134
    %v1229 = vunpack.c.l.b16 %v1135
    %v1230 = vunpack.c.h.b16 %v1135
    %v1231 = vunpack.c.l.b16 %v1136
    %v1232 = vunpack.c.h.b16 %v1136
    %v1233 = vpack.c.b16 %v1169, %v1169
    %v1234 = vpack.c.b16 %v1170, %v1170
    %v1235 = vpack.c.b16 %v1171, %v1171
    %v1236 = vpack.c.b16 %v1172, %v1172
    %v1237 = vpack.c.b16 %v1173, %v1173
    %v1238 = vpack.c.b16 %v1174, %v1174
    %v1239 = vpack.c.b16 %v1175, %v1175
    %v1240 = vpack.c.b16 %v1176, %v1176
    %v1241 = vpack.c.b16 %v1177, %v1177
    %v1242 = vpack.c.b16 %v1178, %v1178
    %v1243 = vpack.c.b16 %v1179, %v1179
    %v1244 = vpack.c.b16 %v1180, %v1180
    %v1245 = vpack.c.b16 %v1181, %v1181
    %v1246 = vpack.c.b16 %v1182, %v1182
    %v1247 = vpack.c.b16 %v1183, %v1183
    %v1248 = vpack.c.b16 %v1184, %v1184
    %v1249 = vpack.c.b16 %v1185, %v1185
    %v1250 = vpack.c.b16 %v1186, %v1186
    %v1251 = vpack.c.b16 %v1187, %v1187
    %v1252 = vpack.c.b16 %v1188, %v1188
    %v1253 = vpack.c.b16 %v1189, %v1189
    %v1254 = vpack.c.b16 %v1190, %v1190
    %v1255 = vpack.c.b16 %v1191, %v1191
    %v1256 = vpack.c.b16 %v1192, %v1192
    %v1257 = vpack.c.b16 %v1193, %v1193
    %v1258 = vpack.c.b16 %v1194, %v1194
    %v1259 = vpack.c.b16 %v1195, %v1195
    %v1260 = vpack.c.b16 %v1196, %v1196
    %v1261 = vpack.c.b16 %v1197, %v1197
    %v1262 = vpack.c.b16 %v1198, %v1198
    %v1263 = vpack.c.b16 %v1199, %v1199
    %v1264 = vpack.c.b16 %v1200, %v1200
    %v1265 = vpack.c.b16 %v1201, %v1201
    %v1266 = vpack.c.b16 %v1202, %v1202
    %v1267 = vpack.c.b16 %v1203, %v1203
    %v1268 = vpack.c.b16 %v1204, %v1204
    %v1269 = vpack.c.b16 %v1205, %v1205
    %v1270 = vpack.c.b16 %v1206, %v1206
    %v1271 = vpack.c.b16 %v1207, %v1207
    %v1272 = vpack.c.b16 %v1208, %v1208
    %v1273 = vpack.c.b16 %v1209, %v1209
    %v1274 = vpack.c.b16 %v1210, %v1210
    %v1275 = vpack.c.b16 %v1211, %v1211
    %v1276 = vpack.c.b16 %v1212, %v1212
    %v1277 = vpack.c.b16 %v1213, %v1213
    %v1278 = vpack.c.b16 %v1214, %v1214
    %v1279 = vpack.c.b16 %v1215, %v1215
    %v1280 = vpack.c.b16 %v1216, %v1216
    %v1281 = vpack.c.b16 %v1217, %v1217
    %v1282 = vpack.c.b16 %v1218, %v1218
    %v1283 = vpack.c.b16 %v1219, %v1219
    %v1284 = vpack.c.b16 %v1220, %v1220
    %v1285 = vpack.c.b16 %v1221, %v1221
    %v1286 = vpack.c.b16 %v1222, %v1222
    %v1287 = vpack.c.b16 %v1223, %v1223
    %v1288 = vpack.c.b16 %v1224, %v1224
    %v1289 = vpack.c.b16 %v1225, %v1225
    %v1290 = vpack.c.b16 %v1226, %v1226
    %v1291 = vpack.c.b16 %v1227, %v1227
    %v1292 = vpack.c.b16 %v1228, %v1228
    %v1293 = vpack.c.b16 %v1229, %v1229
    %v1294 = vpack.c.b16 %v1230, %v1230
    %v1295 = vpack.c.b16 %v1231, %v1231
    %v1296 = vpack.c.b16 %v1232, %v1232
    %vm1361 = vcmask 60416
    %1362 = vst.msk [vmem:[%s3] sm:$0xf] %vm1361, %v1233
    %1363 = vst.msk [vmem:[%s3 + $0x4] sm:$0xf] %vm1361, %v1234
    %1364 = vst.msk [vmem:[%s3 + $0x8] sm:$0xf] %vm1361, %v1235
    %1365 = vst.msk [vmem:[%s3 + $0xc] sm:$0xf] %vm1361, %v1236
    %1366 = vst.msk [vmem:[%s3 + $0x10] sm:$0xf] %vm1361, %v1237
    %1367 = vst.msk [vmem:[%s3 + $0x14] sm:$0xf] %vm1361, %v1238
    %1368 = vst.msk [vmem:[%s3 + $0x18] sm:$0xf] %vm1361, %v1239
    %1369 = vst.msk [vmem:[%s3 + $0x1c] sm:$0xf] %vm1361, %v1240
    %1370 = vst.msk [vmem:[%s3 + $0x20] sm:$0xf] %vm1361, %v1241
    %1371 = vst.msk [vmem:[%s3 + $0x24] sm:$0xf] %vm1361, %v1242
    %1372 = vst.msk [vmem:[%s3 + $0x28] sm:$0xf] %vm1361, %v1243
    %1373 = vst.msk [vmem:[%s3 + $0x2c] sm:$0xf] %vm1361, %v1244
    %1374 = vst.msk [vmem:[%s3 + $0x30] sm:$0xf] %vm1361, %v1245
    %1375 = vst.msk [vmem:[%s3 + $0x34] sm:$0xf] %vm1361, %v1246
    %1376 = vst.msk [vmem:[%s3 + $0x38] sm:$0xf] %vm1361, %v1247
    %1377 = vst.msk [vmem:[%s3 + $0x3c] sm:$0xf] %vm1361, %v1248
    %1378 = vst.msk [vmem:[%s3 + $0x40] sm:$0xf] %vm1361, %v1249
    %1379 = vst.msk [vmem:[%s3 + $0x44] sm:$0xf] %vm1361, %v1250
    %1380 = vst.msk [vmem:[%s3 + $0x48] sm:$0xf] %vm1361, %v1251
    %1381 = vst.msk [vmem:[%s3 + $0x4c] sm:$0xf] %vm1361, %v1252
    %1382 = vst.msk [vmem:[%s3 + $0x50] sm:$0xf] %vm1361, %v1253
    %1383 = vst.msk [vmem:[%s3 + $0x54] sm:$0xf] %vm1361, %v1254
    %1384 = vst.msk [vmem:[%s3 + $0x58] sm:$0xf] %vm1361, %v1255
    %1385 = vst.msk [vmem:[%s3 + $0x5c] sm:$0xf] %vm1361, %v1256
    %1386 = vst.msk [vmem:[%s3 + $0x60] sm:$0xf] %vm1361, %v1257
    %1387 = vst.msk [vmem:[%s3 + $0x64] sm:$0xf] %vm1361, %v1258
    %1388 = vst.msk [vmem:[%s3 + $0x68] sm:$0xf] %vm1361, %v1259
    %1389 = vst.msk [vmem:[%s3 + $0x6c] sm:$0xf] %vm1361, %v1260
    %1390 = vst.msk [vmem:[%s3 + $0x70] sm:$0xf] %vm1361, %v1261
    %1391 = vst.msk [vmem:[%s3 + $0x74] sm:$0xf] %vm1361, %v1262
    %1392 = vst.msk [vmem:[%s3 + $0x78] sm:$0xf] %vm1361, %v1263
    %1393 = vst.msk [vmem:[%s3 + $0x7c] sm:$0xf] %vm1361, %v1264
    %1394 = vst.msk [vmem:[%s3 + $0x80] sm:$0xf] %vm1361, %v1265
    %1395 = vst.msk [vmem:[%s3 + $0x84] sm:$0xf] %vm1361, %v1266
    %1396 = vst.msk [vmem:[%s3 + $0x88] sm:$0xf] %vm1361, %v1267
    %1397 = vst.msk [vmem:[%s3 + $0x8c] sm:$0xf] %vm1361, %v1268
    %1398 = vst.msk [vmem:[%s3 + $0x90] sm:$0xf] %vm1361, %v1269
    %1399 = vst.msk [vmem:[%s3 + $0x94] sm:$0xf] %vm1361, %v1270
    %1400 = vst.msk [vmem:[%s3 + $0x98] sm:$0xf] %vm1361, %v1271
    %1401 = vst.msk [vmem:[%s3 + $0x9c] sm:$0xf] %vm1361, %v1272
    %1402 = vst.msk [vmem:[%s3 + $0xa0] sm:$0xf] %vm1361, %v1273
    %1403 = vst.msk [vmem:[%s3 + $0xa4] sm:$0xf] %vm1361, %v1274
    %1404 = vst.msk [vmem:[%s3 + $0xa8] sm:$0xf] %vm1361, %v1275
    %1405 = vst.msk [vmem:[%s3 + $0xac] sm:$0xf] %vm1361, %v1276
    %1406 = vst.msk [vmem:[%s3 + $0xb0] sm:$0xf] %vm1361, %v1277
    %1407 = vst.msk [vmem:[%s3 + $0xb4] sm:$0xf] %vm1361, %v1278
    %1408 = vst.msk [vmem:[%s3 + $0xb8] sm:$0xf] %vm1361, %v1279
    %1409 = vst.msk [vmem:[%s3 + $0xbc] sm:$0xf] %vm1361, %v1280
    %1410 = vst.msk [vmem:[%s3 + $0xc0] sm:$0xf] %vm1361, %v1281
    %1411 = vst.msk [vmem:[%s3 + $0xc4] sm:$0xf] %vm1361, %v1282
    %1412 = vst.msk [vmem:[%s3 + $0xc8] sm:$0xf] %vm1361, %v1283
    %1413 = vst.msk [vmem:[%s3 + $0xcc] sm:$0xf] %vm1361, %v1284
    %1414 = vst.msk [vmem:[%s3 + $0xd0] sm:$0xf] %vm1361, %v1285
    %1415 = vst.msk [vmem:[%s3 + $0xd4] sm:$0xf] %vm1361, %v1286
    %1416 = vst.msk [vmem:[%s3 + $0xd8] sm:$0xf] %vm1361, %v1287
    %1417 = vst.msk [vmem:[%s3 + $0xdc] sm:$0xf] %vm1361, %v1288
    %1418 = vst.msk [vmem:[%s3 + $0xe0] sm:$0xf] %vm1361, %v1289
    %1419 = vst.msk [vmem:[%s3 + $0xe4] sm:$0xf] %vm1361, %v1290
    %1420 = vst.msk [vmem:[%s3 + $0xe8] sm:$0xf] %vm1361, %v1291
    %1421 = vst.msk [vmem:[%s3 + $0xec] sm:$0xf] %vm1361, %v1292
    %1422 = vst.msk [vmem:[%s3 + $0xf0] sm:$0xf] %vm1361, %v1293
    %1423 = vst.msk [vmem:[%s3 + $0xf4] sm:$0xf] %vm1361, %v1294
    %1424 = vst.msk [vmem:[%s3 + $0xf8] sm:$0xf] %vm1361, %v1295
    %1425 = vst.msk [vmem:[%s3 + $0xfc] sm:$0xf] %vm1361, %v1296
  $region21: #{tpu_custom_call.1} parent=0 // pred_fallthru
    _
  // Predicated region
  $region22: #{tpu_custom_call.1} parent=0 // pred_check
    _
  $region23: #{tpu_custom_call.1} parent=0 // pred_check_branch
    %1427 = sbr.rel (0) target = $region25
  $region24: #{tpu_custom_call.1} parent=0 // pred_region
    _
  $region25: #{tpu_custom_call.1} parent=0 // pred_fallthru
    _
  // Predicated region
  $region26: #{tpu_custom_call.1} parent=0 // pred_check
    _
  $region27: #{tpu_custom_call.1} parent=0 // pred_check_branch
    %1429 = sbr.rel (0) target = $region29
  $region28: #{tpu_custom_call.1} parent=0 // pred_region
    _
  $region29: #{tpu_custom_call.1} parent=0 // pred_fallthru
    _

</llo_original>
